<compile_context>
chip_gen: v5e
topology: v5e:2x2
jax: 0.10.0
libtpu: 0.0.40
codegen_flags: <defaults>
</compile_context>

<pallas_src>
import functools

import jax
import jax.numpy as jnp
from jax import lax
from jax.experimental import pallas as pl
from jax.experimental.pallas import tpu as pltpu

_HALO = 8  # halo block height = one sublane tile; the stencil needs only +/-2 rows


# =============================================================================
# Fused loss kernel: one grid step == one (sample, H-tile)
# =============================================================================
def _fused_loss_kernel(re_ref, x1_ref, x_ref, y_ref, c_ref,
                       p_ref, ptop_ref, pbot_ref,
                       v_ref, vtop_ref, vbot_ref,
                       m0_ref, m1_ref, m2_ref,
                       xl_ref, y0_ref,
                       out_ref, *, T, TH, H):
    f32 = jnp.float32
    WT = y_ref.shape[2]
    h_tile = pl.program_id(1)
    row0 = h_tile * TH                       # global row of the first tile row

    # ---- loads (dtype-agnostic: bf16 storage upcasts to f32 here) ----------
    y = y_ref[0].astype(f32)
    x1 = x1_ref[0].astype(f32)
    x = x_ref[0].astype(f32)
    c = c_ref[0].astype(f32)
    m0 = m0_ref[0].astype(f32)
    m1 = m1_ref[0].astype(f32)
    m2 = m2_ref[0].astype(f32)
    p = p_ref[0].astype(f32)
    vy = v_ref[0, 0].astype(f32)
    vx = v_ref[0, 1].astype(f32)
    re = re_ref[0].astype(f32)

    # Extended slabs (8-row halos above/below) for sublane (H / y) stencils.
    vy_ext = jnp.concatenate(
        [vtop_ref[0, 0].astype(f32), vy, vbot_ref[0, 0].astype(f32)], axis=0)
    vx_ext = jnp.concatenate(
        [vtop_ref[0, 1].astype(f32), vx, vbot_ref[0, 1].astype(f32)], axis=0)
    p_ext = jnp.concatenate(
        [ptop_ref[0].astype(f32), p, pbot_ref[0].astype(f32)], axis=0)
    THE = TH + 2 * _HALO

    # ---- edge masks (lane-only / sublane-only — no full-size slabs) --------
    lane = lax.broadcasted_iota(jnp.int32, (1, WT), 1)
    t_idx = lane % T
    t_first = t_idx == 0
    t_last = t_idx == T - 1
    w_first = lane < T
    w_last = lane >= WT - T
    g_row = lax.broadcasted_iota(jnp.int32, (THE, 1), 0) + (row0 - _HALO)
    gy_first = g_row == 0                     # global row 0
    gy_last = g_row == H - 1                  # global row H-1

    # torch.gradient(u, dim)[0]: edge0 u[1]-u[0]; centre (u[i+1]-u[i-1])/2;
    # edgeN u[-1]-u[-2].  Wrapped roll values only land at edge positions,
    # where the edge formula is selected instead.
    def _grad_lane(u, step, first, last):
        n = u.shape[1]
        nxt = pltpu.roll(u, shift=(-step) % n, axis=1)   # u[., l+step]
        prv = pltpu.roll(u, shift=step % n, axis=1)      # u[., l-step]
        return jnp.where(first, nxt - u,
                         jnp.where(last, u - prv, (nxt - prv) * 0.5))

    grad_t = lambda u: _grad_lane(u, 1, t_first, t_last)   # torch dim 4 (time)
    grad_x = lambda u: _grad_lane(u, T, w_first, w_last)   # torch dim 3 (W / x)

    def grad_y_ext(u):                                     # torch dim 2 (H / y)
        n = u.shape[0]
        nxt = pltpu.roll(u, shift=n - 1, axis=0)           # u[r+1]
        prv = pltpu.roll(u, shift=1, axis=0)               # u[r-1]
        return jnp.where(gy_first, nxt - u,
                         jnp.where(gy_last, u - prv, (nxt - prv) * 0.5))

    mid = lambda a: a[_HALO:_HALO + TH, :]   # ext-sized -> tile-sized (8-aligned)

    # ---- main losses --------------------------------------------------------
    d1 = x1 - y
    d2 = x - y
    s_main1 = jnp.sum(d1 * d1)
    s_main2 = jnp.sum(d2 * d2)

    # ---- physics loss: square-and-accumulate each residual ASAP ------------
    dVxdx = grad_x(vx)
    dVydy_ext = grad_y_ext(vy_ext)
    dVydy = mid(dVydy_ext)
    e3 = (dVxdx + dVydy) * m1
    s_phy = jnp.sum(e3 * e3)

    rem2 = re * m2                           # hoisted: shared by e1 and e2

    dVydt = grad_t(vy)
    dVydx = grad_x(vy)
    dPdy = mid(grad_y_ext(p_ext))
    ddVyddx = grad_x(dVydx)
    ddVyddy = mid(grad_y_ext(dVydy_ext))
    e1 = (dVydt * m0 + (vx * dVydx + vy * dVydy + dPdy) * m1
          - rem2 * (ddVyddx + ddVyddy))
    s_phy = s_phy + jnp.sum(e1 * e1)

    dVxdt = grad_t(vx)
    dVxdy_ext = grad_y_ext(vx_ext)
    dVxdy = mid(dVxdy_ext)
    dPdx = grad_x(p)
    ddVxddx = grad_x(dVxdx)
    ddVxddy = mid(grad_y_ext(dVxdy_ext))
    e2 = (dVxdt * m0 + (vx * dVxdx + vy * dVxdy + dPdx) * m1
          - rem2 * (ddVxddx + ddVxddy))
    s_phy = s_phy + jnp.sum(e2 * e2)

    # ---- time losses --------------------------------------------------------
    # t1: Y_last = cat([X_last, Y[..., :-1]], time): t>=1 via a lane roll; the
    # t==0 column uses the small (TH, W) X_last / Y[..., 0] blocks.
    y_prev = pltpu.roll(y, shift=1, axis=1)
    dsh = y_prev - y
    de = xl_ref[0].astype(f32) - y0_ref[0].astype(f32)
    s_t1 = jnp.sum(jnp.where(t_first, 0.0, dsh * dsh)) + jnp.sum(de * de)

    dt2 = c * m0 - y
    s_t2 = jnp.sum(dt2 * dt2)

    # ---- accumulate per-sample partial sums in the resident output block ----
    row = lax.broadcasted_iota(jnp.int32, (8, 128), 0)
    packed = (jnp.where(row == 0, s_main1, 0.0)
              + jnp.where(row == 1, s_main2, 0.0)
              + jnp.where(row == 2, s_phy, 0.0)
              + jnp.where(row == 3, s_t1, 0.0)
              + jnp.where(row == 4, s_t2, 0.0))

    @pl.when(h_tile == 0)
    def _():
        out_ref[0, :, :] = packed

    @pl.when(h_tile != 0)
    def _():
        out_ref[0, :, :] = out_ref[0, :, :] + packed


# =============================================================================
# pallas_call wrapper
# =============================================================================
def _pick_tile_h(H, tile_h):
    if tile_h is None:
        tile_h = 64
    tile_h = max(8, min(int(tile_h), H))
    tile_h -= tile_h % 8
    while H % tile_h:
        tile_h -= 8
    return tile_h


def _vmem_limit_bytes(block_bytes):
    phys = 64 * 1024 * 1024
    try:
        phys = int(getattr(pltpu.get_tpu_info(), "vmem_capacity_bytes", phys))
    except Exception:
        pass
    # double-buffered inputs + temporaries, clamped to 3/4 of physical VMEM
    # of this generation (v7x: ~48 MiB; v5e/v6e: ~96 MiB).
    return int(min(phys * 3 // 4, max(32 * 1024 * 1024, 4 * block_bytes)))


def _fused_losses(re_arr, x1f, xf, yf, cf, pf, vf, m0f, m1f, m2f, xlf, y0f,
                  *, T, TH):
    N, H, WT = yf.shape
    W = xlf.shape[2]
    NT = H // TH
    thb = TH // _HALO            # tile height in 8-row blocks
    hb_last = H // _HALO - 1     # last valid 8-row block index

    tile = pl.BlockSpec((1, TH, WT), lambda n, h: (n, h, 0))
    small = pl.BlockSpec((1, TH, W), lambda n, h: (n, h, 0))
    smem = pl.BlockSpec(memory_space=pltpu.MemorySpace.SMEM)
    v_tile = pl.BlockSpec((1, 2, TH, WT), lambda n, h: (n, 0, h, 0))
    # 8-row halo blocks just above / below the tile (clamped at the borders;
    # the clamped duplicates are never selected by the global-row edge masks).
    p_top = pl.BlockSpec((1, _HALO, WT),
                         lambda n, h: (n, jnp.maximum(h * thb - 1, 0), 0))
    p_bot = pl.BlockSpec((1, _HALO, WT),
                         lambda n, h: (n, jnp.minimum((h + 1) * thb, hb_last), 0))
    v_top = pl.BlockSpec((1, 2, _HALO, WT),
                         lambda n, h: (n, 0, jnp.maximum(h * thb - 1, 0), 0))
    v_bot = pl.BlockSpec((1, 2, _HALO, WT),
                         lambda n, h: (n, 0, jnp.minimum((h + 1) * thb, hb_last), 0))

    in_bytes = (10 * TH * WT + 6 * _HALO * WT + 2 * TH * W) * yf.dtype.itemsize
    tmp_bytes = 20 * (TH + 2 * _HALO) * WT * 4
    vmem_limit = _vmem_limit_bytes(2 * in_bytes + tmp_bytes)

    kernel = functools.partial(_fused_loss_kernel, T=T, TH=TH, H=H)
    cost = pl.CostEstimate(
        flops=int(N * H * WT * 160),
        transcendentals=0,
        bytes_accessed=int(N * H * (10 * WT + 2 * W) * yf.dtype.itemsize
                           + N * 8 * 128 * 4),
    )
    return pl.pallas_call(
        kernel,
        out_shape=jax.ShapeDtypeStruct((N, 8, 128), jnp.float32),
        grid=(N, NT),
        in_specs=[smem,
                  tile, tile, tile, tile,      # X1, X, Y, C
                  tile, p_top, p_bot,          # P tile + halos
                  v_tile, v_top, v_bot,        # V tile + halos
                  tile, tile, tile,            # masks d0, d1, d2
                  small, small],               # X_last, Y[..., 0]
        out_specs=pl.BlockSpec((1, 8, 128), lambda n, h: (n, 0, 0)),
        compiler_params=pltpu.CompilerParams(
            dimension_semantics=("parallel", "arbitrary"),
            vmem_limit_bytes=vmem_limit),
        cost_estimate=cost,
    )(re_arr, x1f, xf, yf, cf, pf, pf, pf, vf, vf, vf, m0f, m1f, m2f, xlf, y0f)


@functools.partial(jax.jit, static_argnames=("tile_h",))
def loss_forward(C_all, V_all, P_all, X_all, X1_all, Re, X_last, Y_data,
                 maskd0, maskd1, maskd2, tile_h=None):
    N, C, H, W, T = Y_data.shape
    assert C == 1 and V_all.shape[1] == 2, "expects C=1 fields and 2-channel V"
    assert H % 8 == 0, "H must be a multiple of 8 (sublane tiling)"
    TH = _pick_tile_h(H, tile_h)
    WT = W * T

    fold = lambda a: a.reshape(N, H, WT)   # drop C==1, put (W, T) on the lane axis
    x1f, xf, yf = fold(X1_all), fold(X_all), fold(Y_data)
    cf, pf = fold(C_all), fold(P_all)
    m0f, m1f, m2f = fold(maskd0), fold(maskd1), fold(maskd2)
    vf = V_all.reshape(N, 2, H, WT)
    xlf = X_last.reshape(N, H, W)          # t == 0 column of Y_last
    y0f = Y_data[:, 0, :, :, 0]            # Y[..., 0]
    re_arr = jnp.asarray(Re, jnp.float32).reshape(1)

    part = _fused_losses(re_arr, x1f, xf, yf, cf, pf, vf, m0f, m1f, m2f,
                         xlf, y0f, T=T, TH=TH)
    sums = jnp.sum(part[:, :5, 0], axis=0)   # tiny cross-batch combine

    n_el = jnp.float32(N * H * W * T)
    main1 = sums[0] / n_el
    main2 = sums[1] / n_el
    phy = sums[2] / n_el      # sum(e1^2+e2^2+e3^2)/n == mean+mean+mean (same count)
    t1 = sums[3] / n_el
    t2 = sums[4] / n_el
    time_loss = jnp.where(t1 < t2, t2 - t1, jnp.float32(0.0))
    return main1, main2, phy, time_loss


# =============================================================================
# Pure-JAX reference (torch semantics, 5-D NCHWT) for sanity checking
# =============================================================================
def _tgrad_ref(x, axis):
    n = x.shape[axis]

    def sl(lo, hi):
        idx = [slice(None)] * x.ndim
        idx[axis] = slice(lo, hi)
        return x[tuple(idx)]

    first = sl(1, 2) - sl(0, 1)
    center = (sl(2, n) - sl(0, n - 2)) * 0.5
    last = sl(n - 1, n) - sl(n - 2, n - 1)
    return jnp.concatenate([first, center, last], axis=axis)


def _ref_forward(C_all, V_all, P_all, X_all, X1_all, Re, X_last, Y_data,
                 maskd0, maskd1, maskd2):
    mse = lambda a, b: jnp.mean((a - b) ** 2)
    main1 = mse(X1_all, Y_data)
    main2 = mse(X_all, Y_data)

    Vy = V_all[:, :1]
    Vx = V_all[:, 1:]
    dVydt, dVydx, dVydy = _tgrad_ref(Vy, 4), _tgrad_ref(Vy, 3), _tgrad_ref(Vy, 2)
    dVxdt, dVxdx, dVxdy = _tgrad_ref(Vx, 4), _tgrad_ref(Vx, 3), _tgrad_ref(Vx, 2)
    dPdx, dPdy = _tgrad_ref(P_all, 3), _tgrad_ref(P_all, 2)
    ddVxddx, ddVxddy = _tgrad_ref(dVxdx, 3), _tgrad_ref(dVxdy, 2)
    ddVyddx, ddVyddy = _tgrad_ref(dVydx, 3), _tgrad_ref(dVydy, 2)
    e1 = dVydt * maskd0 + (Vx * dVydx + Vy * dVydy + dPdy) * maskd1 \
        - Re * (ddVyddx + ddVyddy) * maskd2
    e2 = dVxdt * maskd0 + (Vx * dVxdx + Vy * dVxdy + dPdx) * maskd1 \
        - Re * (ddVxddx + ddVxddy) * maskd2
    e3 = (dVxdx + dVydy) * maskd1
    phy = (mse(e1, jnp.zeros_like(e1)) + mse(e2, jnp.zeros_like(e2))
           + mse(e3, jnp.zeros_like(e3)))

    Y_last = jnp.concatenate([X_last, Y_data[..., :-1]], axis=4)
    t1 = mse(Y_last, Y_data)
    t2 = mse(C_all * maskd0, Y_data)
    time_loss = jnp.where(t1 < t2, t2 - t1, jnp.float32(0.0))
    return main1, main2, phy, time_loss


if __name__ == "__main__":
    # Small shapes: N=2, C=1 (V has 2 channels), H=W=16, T=8 -> W*T = 128 lanes
    N, H, W, T = 2, 16, 16, 8
    key = jax.random.PRNGKey(0)
    ks = jax.random.split(key, 10)

    C_all = jax.random.normal(ks[0], (N, 1, H, W, T), jnp.float32)
    V_all = jax.random.normal(ks[1], (N, 2, H, W, T), jnp.float32)
    P_all = jax.random.normal(ks[2], (N, 1, H, W, T), jnp.float32)
    X_all = jax.random.normal(ks[3], (N, 1, H, W, T), jnp.float32)
    X1_all = jax.random.normal(ks[4], (N, 1, H, W, T), jnp.float32)
    X_last = jax.random.normal(ks[5], (N, 1, H, W, 1), jnp.float32)
    Y_data = jax.random.normal(ks[6], (N, 1, H, W, T), jnp.float32)
    maskd0 = (jax.random.uniform(ks[7], (N, 1, H, W, T)) > 0.5).astype(jnp.float32)
    maskd1 = (jax.random.uniform(ks[8], (N, 1, H, W, T)) > 0.5).astype(jnp.float32)
    maskd2 = (jax.random.uniform(ks[9], (N, 1, H, W, T)) > 0.5).astype(jnp.float32)
    Re = jnp.float32(0.01)

    args = (C_all, V_all, P_all, X_all, X1_all, Re, X_last, Y_data,
            maskd0, maskd1, maskd2)
    ref = _ref_forward(*args)

    # Multi-tile path: 2 H-tiles of 8 rows each -> exercises real halos.
    out = jax.block_until_ready(loss_forward(*args, tile_h=8))
    for got, want in zip(out, ref):
        assert jnp.allclose(got, want, rtol=1e-3, atol=1e-5), (got, want)

    # Single-tile path: halo blocks clamped on both sides.
    out1 = jax.block_until_ready(loss_forward(*args, tile_h=16))
    for got, want in zip(out1, ref):
        assert jnp.allclose(got, want, rtol=1e-3, atol=1e-5), (got, want)

    # Exercise the non-zero Time_loss branch (Y constant along t => t1 < t2).
    Y_const = jnp.repeat(Y_data[..., :1], T, axis=4)
    args2 = (C_all, V_all, P_all, X_all, X1_all, Re, X_last, Y_const,
             maskd0, maskd1, maskd2)
    out2 = jax.block_until_ready(loss_forward(*args2, tile_h=8))
    ref2 = _ref_forward(*args2)
    for got, want in zip(out2, ref2):
        assert jnp.allclose(got, want, rtol=1e-3, atol=1e-5), (got, want)

    print("KERNEL_OK")
</pallas_src>

<mosaic_0001>
module attributes {stable_mosaic.version = 11 : i64} {
  func.func @_fused_loss_kernel(%arg0: i32, %arg1: i32, %arg2: memref<1xf32, #tpu.memory_space<smem>>, %arg3: memref<1x8x128xf32, #tpu.memory_space<vmem>>, %arg4: memref<1x8x128xf32, #tpu.memory_space<vmem>>, %arg5: memref<1x8x128xf32, #tpu.memory_space<vmem>>, %arg6: memref<1x8x128xf32, #tpu.memory_space<vmem>>, %arg7: memref<1x8x128xf32, #tpu.memory_space<vmem>>, %arg8: memref<1x8x128xf32, #tpu.memory_space<vmem>>, %arg9: memref<1x8x128xf32, #tpu.memory_space<vmem>>, %arg10: memref<1x2x8x128xf32, #tpu.memory_space<vmem>>, %arg11: memref<1x2x8x128xf32, #tpu.memory_space<vmem>>, %arg12: memref<1x2x8x128xf32, #tpu.memory_space<vmem>>, %arg13: memref<1x8x128xf32, #tpu.memory_space<vmem>>, %arg14: memref<1x8x128xf32, #tpu.memory_space<vmem>>, %arg15: memref<1x8x128xf32, #tpu.memory_space<vmem>>, %arg16: memref<1x8x16xf32, #tpu.memory_space<vmem>>, %arg17: memref<1x8x16xf32, #tpu.memory_space<vmem>>, %arg18: memref<1x8x128xf32, #tpu.memory_space<vmem>>) attributes {dimension_semantics = [#tpu.dimension_semantics<parallel>, #tpu.dimension_semantics<arbitrary>], iteration_bounds = array<i64: 2, 2>, scalar_prefetch = 0 : i64, scratch_operands = 0 : i64, tpu.core_type = #tpu.core_type<tc>, window_params = [{transform_indices = @transform_0, window_bounds = array<i64: 1>}, {transform_indices = @transform_1, window_bounds = array<i64: 1, 8, 128>}, {transform_indices = @transform_2, window_bounds = array<i64: 1, 8, 128>}, {transform_indices = @transform_3, window_bounds = array<i64: 1, 8, 128>}, {transform_indices = @transform_4, window_bounds = array<i64: 1, 8, 128>}, {transform_indices = @transform_5, window_bounds = array<i64: 1, 8, 128>}, {transform_indices = @transform_6, window_bounds = array<i64: 1, 8, 128>}, {transform_indices = @transform_7, window_bounds = array<i64: 1, 8, 128>}, {transform_indices = @transform_8, window_bounds = array<i64: 1, 2, 8, 128>}, {transform_indices = @transform_9, window_bounds = array<i64: 1, 2, 8, 128>}, {transform_indices = @transform_10, window_bounds = array<i64: 1, 2, 8, 128>}, {transform_indices = @transform_11, window_bounds = array<i64: 1, 8, 128>}, {transform_indices = @transform_12, window_bounds = array<i64: 1, 8, 128>}, {transform_indices = @transform_13, window_bounds = array<i64: 1, 8, 128>}, {transform_indices = @transform_14, window_bounds = array<i64: 1, 8, 16>}, {transform_indices = @transform_15, window_bounds = array<i64: 1, 8, 16>}, {transform_indices = @transform_16, window_bounds = array<i64: 1, 8, 128>}]} {
    %c8_i32 = arith.constant 8 : i32
    %0 = arith.muli %arg1, %c8_i32 : i32
    %c0 = arith.constant 0 : index
    %c0_0 = arith.constant 0 : index
    %c0_1 = arith.constant 0 : index
    %1 = vector.load %arg5[%c0, %c0_0, %c0_1] : memref<1x8x128xf32, #tpu.memory_space<vmem>>, vector<1x8x128xf32>
    %2 = vector.shape_cast %1 : vector<1x8x128xf32> to vector<8x128xf32>
    %c0_2 = arith.constant 0 : index
    %c0_3 = arith.constant 0 : index
    %c0_4 = arith.constant 0 : index
    %3 = vector.load %arg3[%c0_2, %c0_3, %c0_4] : memref<1x8x128xf32, #tpu.memory_space<vmem>>, vector<1x8x128xf32>
    %4 = vector.shape_cast %3 : vector<1x8x128xf32> to vector<8x128xf32>
    %c0_5 = arith.constant 0 : index
    %c0_6 = arith.constant 0 : index
    %c0_7 = arith.constant 0 : index
    %5 = vector.load %arg4[%c0_5, %c0_6, %c0_7] : memref<1x8x128xf32, #tpu.memory_space<vmem>>, vector<1x8x128xf32>
    %6 = vector.shape_cast %5 : vector<1x8x128xf32> to vector<8x128xf32>
    %c0_8 = arith.constant 0 : index
    %c0_9 = arith.constant 0 : index
    %c0_10 = arith.constant 0 : index
    %7 = vector.load %arg6[%c0_8, %c0_9, %c0_10] : memref<1x8x128xf32, #tpu.memory_space<vmem>>, vector<1x8x128xf32>
    %8 = vector.shape_cast %7 : vector<1x8x128xf32> to vector<8x128xf32>
    %c0_11 = arith.constant 0 : index
    %c0_12 = arith.constant 0 : index
    %c0_13 = arith.constant 0 : index
    %9 = vector.load %arg13[%c0_11, %c0_12, %c0_13] : memref<1x8x128xf32, #tpu.memory_space<vmem>>, vector<1x8x128xf32>
    %10 = vector.shape_cast %9 : vector<1x8x128xf32> to vector<8x128xf32>
    %c0_14 = arith.constant 0 : index
    %c0_15 = arith.constant 0 : index
    %c0_16 = arith.constant 0 : index
    %11 = vector.load %arg14[%c0_14, %c0_15, %c0_16] : memref<1x8x128xf32, #tpu.memory_space<vmem>>, vector<1x8x128xf32>
    %12 = vector.shape_cast %11 : vector<1x8x128xf32> to vector<8x128xf32>
    %c0_17 = arith.constant 0 : index
    %c0_18 = arith.constant 0 : index
    %c0_19 = arith.constant 0 : index
    %13 = vector.load %arg15[%c0_17, %c0_18, %c0_19] : memref<1x8x128xf32, #tpu.memory_space<vmem>>, vector<1x8x128xf32>
    %14 = vector.shape_cast %13 : vector<1x8x128xf32> to vector<8x128xf32>
    %c0_20 = arith.constant 0 : index
    %c0_21 = arith.constant 0 : index
    %c0_22 = arith.constant 0 : index
    %15 = vector.load %arg7[%c0_20, %c0_21, %c0_22] : memref<1x8x128xf32, #tpu.memory_space<vmem>>, vector<1x8x128xf32>
    %16 = vector.shape_cast %15 : vector<1x8x128xf32> to vector<8x128xf32>
    %c0_23 = arith.constant 0 : index
    %c0_24 = arith.constant 0 : index
    %c0_25 = arith.constant 0 : index
    %c0_26 = arith.constant 0 : index
    %17 = vector.load %arg10[%c0_23, %c0_24, %c0_25, %c0_26] : memref<1x2x8x128xf32, #tpu.memory_space<vmem>>, vector<1x1x8x128xf32>
    %18 = vector.shape_cast %17 : vector<1x1x8x128xf32> to vector<8x128xf32>
    %c0_27 = arith.constant 0 : index
    %c1 = arith.constant 1 : index
    %c0_28 = arith.constant 0 : index
    %c0_29 = arith.constant 0 : index
    %19 = vector.load %arg10[%c0_27, %c1, %c0_28, %c0_29] : memref<1x2x8x128xf32, #tpu.memory_space<vmem>>, vector<1x1x8x128xf32>
    %20 = vector.shape_cast %19 : vector<1x1x8x128xf32> to vector<8x128xf32>
    %c0_30 = arith.constant 0 : index
    %21 = memref.load %arg2[%c0_30] : memref<1xf32, #tpu.memory_space<smem>>
    %c0_31 = arith.constant 0 : index
    %c0_32 = arith.constant 0 : index
    %c0_33 = arith.constant 0 : index
    %c0_34 = arith.constant 0 : index
    %22 = vector.load %arg11[%c0_31, %c0_32, %c0_33, %c0_34] : memref<1x2x8x128xf32, #tpu.memory_space<vmem>>, vector<1x1x8x128xf32>
    %23 = vector.shape_cast %22 : vector<1x1x8x128xf32> to vector<8x128xf32>
    %c0_35 = arith.constant 0 : index
    %c0_36 = arith.constant 0 : index
    %c0_37 = arith.constant 0 : index
    %c0_38 = arith.constant 0 : index
    %24 = vector.load %arg12[%c0_35, %c0_36, %c0_37, %c0_38] : memref<1x2x8x128xf32, #tpu.memory_space<vmem>>, vector<1x1x8x128xf32>
    %25 = vector.shape_cast %24 : vector<1x1x8x128xf32> to vector<8x128xf32>
    %26 = tpu.concatenate %23, %18, %25 in 0 : vector<8x128xf32>, vector<8x128xf32>, vector<8x128xf32> -> vector<24x128xf32>
    %c0_39 = arith.constant 0 : index
    %c1_40 = arith.constant 1 : index
    %c0_41 = arith.constant 0 : index
    %c0_42 = arith.constant 0 : index
    %27 = vector.load %arg11[%c0_39, %c1_40, %c0_41, %c0_42] : memref<1x2x8x128xf32, #tpu.memory_space<vmem>>, vector<1x1x8x128xf32>
    %28 = vector.shape_cast %27 : vector<1x1x8x128xf32> to vector<8x128xf32>
    %c0_43 = arith.constant 0 : index
    %c1_44 = arith.constant 1 : index
    %c0_45 = arith.constant 0 : index
    %c0_46 = arith.constant 0 : index
    %29 = vector.load %arg12[%c0_43, %c1_44, %c0_45, %c0_46] : memref<1x2x8x128xf32, #tpu.memory_space<vmem>>, vector<1x1x8x128xf32>
    %30 = vector.shape_cast %29 : vector<1x1x8x128xf32> to vector<8x128xf32>
    %31 = tpu.concatenate %28, %20, %30 in 0 : vector<8x128xf32>, vector<8x128xf32>, vector<8x128xf32> -> vector<24x128xf32>
    %c0_47 = arith.constant 0 : index
    %c0_48 = arith.constant 0 : index
    %c0_49 = arith.constant 0 : index
    %32 = vector.load %arg8[%c0_47, %c0_48, %c0_49] : memref<1x8x128xf32, #tpu.memory_space<vmem>>, vector<1x8x128xf32>
    %33 = vector.shape_cast %32 : vector<1x8x128xf32> to vector<8x128xf32>
    %c0_50 = arith.constant 0 : index
    %c0_51 = arith.constant 0 : index
    %c0_52 = arith.constant 0 : index
    %34 = vector.load %arg9[%c0_50, %c0_51, %c0_52] : memref<1x8x128xf32, #tpu.memory_space<vmem>>, vector<1x8x128xf32>
    %35 = vector.shape_cast %34 : vector<1x8x128xf32> to vector<8x128xf32>
    %36 = tpu.concatenate %33, %16, %35 in 0 : vector<8x128xf32>, vector<8x128xf32>, vector<8x128xf32> -> vector<24x128xf32>
    %37 = tpu.iota {dimensions = array<i32: 1>} : vector<1x128xi32>
    %c8_i32_53 = arith.constant 8 : i32
    %c0_i32 = arith.constant 0 : i32
    %38 = arith.cmpi eq, %c8_i32_53, %c0_i32 : i32
    %c1_i32 = arith.constant 1 : i32
    %39 = arith.select %38, %c1_i32, %c8_i32_53 : i32
    %40 = vector.broadcast %39 : i32 to vector<1x128xi32>
    %41 = arith.remsi %37, %40 : vector<1x128xi32>
    %c0_i32_54 = arith.constant 0 : i32
    %42 = vector.broadcast %c0_i32_54 : i32 to vector<1x128xi32>
    %43 = arith.cmpi ne, %41, %42 : vector<1x128xi32>
    %c0_i32_55 = arith.constant 0 : i32
    %44 = vector.broadcast %c0_i32_55 : i32 to vector<1x128xi32>
    %45 = arith.cmpi slt, %41, %44 : vector<1x128xi32>
    %c0_i32_56 = arith.constant 0 : i32
    %46 = arith.cmpi slt, %39, %c0_i32_56 : i32
    %47 = vector.broadcast %46 : i1 to vector<1x128xi1>
    %48 = vector.broadcast %47 : vector<1x128xi1> to vector<1x128xi1>
    %49 = arith.xori %45, %48 : vector<1x128xi1>
    %50 = arith.andi %49, %43 : vector<1x128xi1>
    %51 = vector.broadcast %39 : i32 to vector<1x128xi32>
    %52 = arith.addi %41, %51 : vector<1x128xi32>
    %53 = arith.select %50, %52, %41 : vector<1x128xi1>, vector<1x128xi32>
    %c0_i32_57 = arith.constant 0 : i32
    %54 = vector.broadcast %c0_i32_57 : i32 to vector<1x128xi32>
    %55 = arith.cmpi eq, %53, %54 : vector<1x128xi32>
    %c7_i32 = arith.constant 7 : i32
    %56 = vector.broadcast %c7_i32 : i32 to vector<1x128xi32>
    %57 = arith.cmpi eq, %53, %56 : vector<1x128xi32>
    %c8_i32_58 = arith.constant 8 : i32
    %58 = vector.broadcast %c8_i32_58 : i32 to vector<1x128xi32>
    %59 = arith.cmpi slt, %37, %58 : vector<1x128xi32>
    %c120_i32 = arith.constant 120 : i32
    %60 = vector.broadcast %c120_i32 : i32 to vector<1x128xi32>
    %61 = arith.cmpi sge, %37, %60 : vector<1x128xi32>
    %62 = tpu.iota {dimensions = array<i32: 0>} : vector<24x1xi32>
    %c8_i32_59 = arith.constant 8 : i32
    %63 = arith.subi %0, %c8_i32_59 : i32
    %64 = vector.broadcast %63 : i32 to vector<24x1xi32>
    %65 = arith.addi %62, %64 : vector<24x1xi32>
    %c0_i32_60 = arith.constant 0 : i32
    %66 = vector.broadcast %c0_i32_60 : i32 to vector<24x1xi32>
    %67 = arith.cmpi eq, %65, %66 : vector<24x1xi32>
    %c15_i32 = arith.constant 15 : i32
    %68 = vector.broadcast %c15_i32 : i32 to vector<24x1xi32>
    %69 = arith.cmpi eq, %65, %68 : vector<24x1xi32>
    %70 = arith.subf %4, %2 : vector<8x128xf32>
    %71 = arith.subf %6, %2 : vector<8x128xf32>
    %72 = arith.mulf %70, %70 : vector<8x128xf32>
    %73 = vector.shape_cast %72 : vector<8x128xf32> to vector<1x8x128xf32>
    %cst = arith.constant dense<0.000000e+00> : vector<1xf32>
    %74 = vector.multi_reduction <add>, %73, %cst [1, 2] : vector<1x8x128xf32> to vector<1xf32>
    %75 = vector.shape_cast %74 : vector<1xf32> to vector<1x1x1xf32>
    %76 = vector.extract %75[0, 0, 0] : f32 from vector<1x1x1xf32>
    %77 = arith.mulf %71, %71 : vector<8x128xf32>
    %78 = vector.shape_cast %77 : vector<8x128xf32> to vector<1x8x128xf32>
    %cst_61 = arith.constant dense<0.000000e+00> : vector<1xf32>
    %79 = vector.multi_reduction <add>, %78, %cst_61 [1, 2] : vector<1x8x128xf32> to vector<1xf32>
    %80 = vector.shape_cast %79 : vector<1xf32> to vector<1x1x1xf32>
    %81 = vector.extract %80[0, 0, 0] : f32 from vector<1x1x1xf32>
    %c120_i32_62 = arith.constant 120 : i32
    %82 = tpu.dynamic_rotate %20 by %c120_i32_62 dim 1 : vector<8x128xf32>, i32 -> vector<8x128xf32>
    %c8_i32_63 = arith.constant 8 : i32
    %83 = tpu.dynamic_rotate %20 by %c8_i32_63 dim 1 : vector<8x128xf32>, i32 -> vector<8x128xf32>
    %84 = arith.subf %82, %20 : vector<8x128xf32>
    %85 = arith.subf %20, %83 : vector<8x128xf32>
    %86 = arith.subf %82, %83 : vector<8x128xf32>
    %cst_64 = arith.constant 5.000000e-01 : f32
    %87 = vector.broadcast %cst_64 : f32 to vector<8x128xf32>
    %88 = arith.mulf %86, %87 : vector<8x128xf32>
    %89 = vector.shape_cast %61 : vector<1x128xi1> to vector<1x128xi1>
    %90 = vector.broadcast %89 : vector<1x128xi1> to vector<8x128xi1>
    %91 = arith.select %90, %85, %88 : vector<8x128xi1>, vector<8x128xf32>
    %92 = vector.shape_cast %59 : vector<1x128xi1> to vector<1x128xi1>
    %93 = vector.broadcast %92 : vector<1x128xi1> to vector<8x128xi1>
    %94 = arith.select %93, %84, %91 : vector<8x128xi1>, vector<8x128xf32>
    %c23_i32 = arith.constant 23 : i32
    %95 = tpu.dynamic_rotate %26 by %c23_i32 dim 0 : vector<24x128xf32>, i32 -> vector<24x128xf32>
    %c1_i32_65 = arith.constant 1 : i32
    %96 = tpu.dynamic_rotate %26 by %c1_i32_65 dim 0 : vector<24x128xf32>, i32 -> vector<24x128xf32>
    %97 = arith.subf %95, %26 : vector<24x128xf32>
    %98 = arith.subf %26, %96 : vector<24x128xf32>
    %99 = arith.subf %95, %96 : vector<24x128xf32>
    %cst_66 = arith.constant 5.000000e-01 : f32
    %100 = vector.broadcast %cst_66 : f32 to vector<24x128xf32>
    %101 = arith.mulf %99, %100 : vector<24x128xf32>
    %102 = vector.shape_cast %69 : vector<24x1xi1> to vector<24x1xi1>
    %103 = vector.broadcast %102 : vector<24x1xi1> to vector<24x128xi1>
    %104 = arith.select %103, %98, %101 : vector<24x128xi1>, vector<24x128xf32>
    %105 = vector.shape_cast %67 : vector<24x1xi1> to vector<24x1xi1>
    %106 = vector.broadcast %105 : vector<24x1xi1> to vector<24x128xi1>
    %107 = arith.select %106, %97, %104 : vector<24x128xi1>, vector<24x128xf32>
    %108 = vector.extract_strided_slice %107 {offsets = [8, 0], sizes = [8, 128], strides = [1, 1]} : vector<24x128xf32> to vector<8x128xf32>
    %109 = arith.addf %94, %108 : vector<8x128xf32>
    %110 = arith.mulf %109, %12 : vector<8x128xf32>
    %111 = arith.mulf %110, %110 : vector<8x128xf32>
    %112 = vector.shape_cast %111 : vector<8x128xf32> to vector<1x8x128xf32>
    %cst_67 = arith.constant dense<0.000000e+00> : vector<1xf32>
    %113 = vector.multi_reduction <add>, %112, %cst_67 [1, 2] : vector<1x8x128xf32> to vector<1xf32>
    %114 = vector.shape_cast %113 : vector<1xf32> to vector<1x1x1xf32>
    %115 = vector.extract %114[0, 0, 0] : f32 from vector<1x1x1xf32>
    %116 = vector.broadcast %21 : f32 to vector<8x128xf32>
    %117 = arith.mulf %116, %14 : vector<8x128xf32>
    %c127_i32 = arith.constant 127 : i32
    %118 = tpu.dynamic_rotate %18 by %c127_i32 dim 1 : vector<8x128xf32>, i32 -> vector<8x128xf32>
    %c1_i32_68 = arith.constant 1 : i32
    %119 = tpu.dynamic_rotate %18 by %c1_i32_68 dim 1 : vector<8x128xf32>, i32 -> vector<8x128xf32>
    %120 = arith.subf %118, %18 : vector<8x128xf32>
    %121 = arith.subf %18, %119 : vector<8x128xf32>
    %122 = arith.subf %118, %119 : vector<8x128xf32>
    %cst_69 = arith.constant 5.000000e-01 : f32
    %123 = vector.broadcast %cst_69 : f32 to vector<8x128xf32>
    %124 = arith.mulf %122, %123 : vector<8x128xf32>
    %125 = vector.shape_cast %57 : vector<1x128xi1> to vector<1x128xi1>
    %126 = vector.broadcast %125 : vector<1x128xi1> to vector<8x128xi1>
    %127 = arith.select %126, %121, %124 : vector<8x128xi1>, vector<8x128xf32>
    %128 = vector.shape_cast %55 : vector<1x128xi1> to vector<1x128xi1>
    %129 = vector.broadcast %128 : vector<1x128xi1> to vector<8x128xi1>
    %130 = arith.select %129, %120, %127 : vector<8x128xi1>, vector<8x128xf32>
    %c120_i32_70 = arith.constant 120 : i32
    %131 = tpu.dynamic_rotate %18 by %c120_i32_70 dim 1 : vector<8x128xf32>, i32 -> vector<8x128xf32>
    %c8_i32_71 = arith.constant 8 : i32
    %132 = tpu.dynamic_rotate %18 by %c8_i32_71 dim 1 : vector<8x128xf32>, i32 -> vector<8x128xf32>
    %133 = arith.subf %131, %18 : vector<8x128xf32>
    %134 = arith.subf %18, %132 : vector<8x128xf32>
    %135 = arith.subf %131, %132 : vector<8x128xf32>
    %cst_72 = arith.constant 5.000000e-01 : f32
    %136 = vector.broadcast %cst_72 : f32 to vector<8x128xf32>
    %137 = arith.mulf %135, %136 : vector<8x128xf32>
    %138 = vector.shape_cast %61 : vector<1x128xi1> to vector<1x128xi1>
    %139 = vector.broadcast %138 : vector<1x128xi1> to vector<8x128xi1>
    %140 = arith.select %139, %134, %137 : vector<8x128xi1>, vector<8x128xf32>
    %141 = vector.shape_cast %59 : vector<1x128xi1> to vector<1x128xi1>
    %142 = vector.broadcast %141 : vector<1x128xi1> to vector<8x128xi1>
    %143 = arith.select %142, %133, %140 : vector<8x128xi1>, vector<8x128xf32>
    %c23_i32_73 = arith.constant 23 : i32
    %144 = tpu.dynamic_rotate %36 by %c23_i32_73 dim 0 : vector<24x128xf32>, i32 -> vector<24x128xf32>
    %c1_i32_74 = arith.constant 1 : i32
    %145 = tpu.dynamic_rotate %36 by %c1_i32_74 dim 0 : vector<24x128xf32>, i32 -> vector<24x128xf32>
    %146 = arith.subf %144, %36 : vector<24x128xf32>
    %147 = arith.subf %36, %145 : vector<24x128xf32>
    %148 = arith.subf %144, %145 : vector<24x128xf32>
    %cst_75 = arith.constant 5.000000e-01 : f32
    %149 = vector.broadcast %cst_75 : f32 to vector<24x128xf32>
    %150 = arith.mulf %148, %149 : vector<24x128xf32>
    %151 = vector.shape_cast %69 : vector<24x1xi1> to vector<24x1xi1>
    %152 = vector.broadcast %151 : vector<24x1xi1> to vector<24x128xi1>
    %153 = arith.select %152, %147, %150 : vector<24x128xi1>, vector<24x128xf32>
    %154 = vector.shape_cast %67 : vector<24x1xi1> to vector<24x1xi1>
    %155 = vector.broadcast %154 : vector<24x1xi1> to vector<24x128xi1>
    %156 = arith.select %155, %146, %153 : vector<24x128xi1>, vector<24x128xf32>
    %157 = vector.extract_strided_slice %156 {offsets = [8, 0], sizes = [8, 128], strides = [1, 1]} : vector<24x128xf32> to vector<8x128xf32>
    %c120_i32_76 = arith.constant 120 : i32
    %158 = tpu.dynamic_rotate %143 by %c120_i32_76 dim 1 : vector<8x128xf32>, i32 -> vector<8x128xf32>
    %c8_i32_77 = arith.constant 8 : i32
    %159 = tpu.dynamic_rotate %143 by %c8_i32_77 dim 1 : vector<8x128xf32>, i32 -> vector<8x128xf32>
    %160 = arith.subf %158, %143 : vector<8x128xf32>
    %161 = arith.subf %143, %159 : vector<8x128xf32>
    %162 = arith.subf %158, %159 : vector<8x128xf32>
    %cst_78 = arith.constant 5.000000e-01 : f32
    %163 = vector.broadcast %cst_78 : f32 to vector<8x128xf32>
    %164 = arith.mulf %162, %163 : vector<8x128xf32>
    %165 = vector.shape_cast %61 : vector<1x128xi1> to vector<1x128xi1>
    %166 = vector.broadcast %165 : vector<1x128xi1> to vector<8x128xi1>
    %167 = arith.select %166, %161, %164 : vector<8x128xi1>, vector<8x128xf32>
    %168 = vector.shape_cast %59 : vector<1x128xi1> to vector<1x128xi1>
    %169 = vector.broadcast %168 : vector<1x128xi1> to vector<8x128xi1>
    %170 = arith.select %169, %160, %167 : vector<8x128xi1>, vector<8x128xf32>
    %c23_i32_79 = arith.constant 23 : i32
    %171 = tpu.dynamic_rotate %107 by %c23_i32_79 dim 0 : vector<24x128xf32>, i32 -> vector<24x128xf32>
    %c1_i32_80 = arith.constant 1 : i32
    %172 = tpu.dynamic_rotate %107 by %c1_i32_80 dim 0 : vector<24x128xf32>, i32 -> vector<24x128xf32>
    %173 = arith.subf %171, %107 : vector<24x128xf32>
    %174 = arith.subf %107, %172 : vector<24x128xf32>
    %175 = arith.subf %171, %172 : vector<24x128xf32>
    %cst_81 = arith.constant 5.000000e-01 : f32
    %176 = vector.broadcast %cst_81 : f32 to vector<24x128xf32>
    %177 = arith.mulf %175, %176 : vector<24x128xf32>
    %178 = vector.shape_cast %69 : vector<24x1xi1> to vector<24x1xi1>
    %179 = vector.broadcast %178 : vector<24x1xi1> to vector<24x128xi1>
    %180 = arith.select %179, %174, %177 : vector<24x128xi1>, vector<24x128xf32>
    %181 = vector.shape_cast %67 : vector<24x1xi1> to vector<24x1xi1>
    %182 = vector.broadcast %181 : vector<24x1xi1> to vector<24x128xi1>
    %183 = arith.select %182, %173, %180 : vector<24x128xi1>, vector<24x128xf32>
    %184 = vector.extract_strided_slice %183 {offsets = [8, 0], sizes = [8, 128], strides = [1, 1]} : vector<24x128xf32> to vector<8x128xf32>
    %185 = arith.mulf %130, %10 : vector<8x128xf32>
    %186 = arith.mulf %20, %143 : vector<8x128xf32>
    %187 = arith.mulf %18, %108 : vector<8x128xf32>
    %188 = arith.addf %186, %187 : vector<8x128xf32>
    %189 = arith.addf %188, %157 : vector<8x128xf32>
    %190 = arith.mulf %189, %12 : vector<8x128xf32>
    %191 = arith.addf %185, %190 : vector<8x128xf32>
    %192 = arith.addf %170, %184 : vector<8x128xf32>
    %193 = arith.mulf %117, %192 : vector<8x128xf32>
    %194 = arith.subf %191, %193 : vector<8x128xf32>
    %195 = arith.mulf %194, %194 : vector<8x128xf32>
    %196 = vector.shape_cast %195 : vector<8x128xf32> to vector<1x8x128xf32>
    %cst_82 = arith.constant dense<0.000000e+00> : vector<1xf32>
    %197 = vector.multi_reduction <add>, %196, %cst_82 [1, 2] : vector<1x8x128xf32> to vector<1xf32>
    %198 = vector.shape_cast %197 : vector<1xf32> to vector<1x1x1xf32>
    %199 = vector.extract %198[0, 0, 0] : f32 from vector<1x1x1xf32>
    %200 = arith.addf %115, %199 : f32
    %c127_i32_83 = arith.constant 127 : i32
    %201 = tpu.dynamic_rotate %20 by %c127_i32_83 dim 1 : vector<8x128xf32>, i32 -> vector<8x128xf32>
    %c1_i32_84 = arith.constant 1 : i32
    %202 = tpu.dynamic_rotate %20 by %c1_i32_84 dim 1 : vector<8x128xf32>, i32 -> vector<8x128xf32>
    %203 = arith.subf %201, %20 : vector<8x128xf32>
    %204 = arith.subf %20, %202 : vector<8x128xf32>
    %205 = arith.subf %201, %202 : vector<8x128xf32>
    %cst_85 = arith.constant 5.000000e-01 : f32
    %206 = vector.broadcast %cst_85 : f32 to vector<8x128xf32>
    %207 = arith.mulf %205, %206 : vector<8x128xf32>
    %208 = vector.shape_cast %57 : vector<1x128xi1> to vector<1x128xi1>
    %209 = vector.broadcast %208 : vector<1x128xi1> to vector<8x128xi1>
    %210 = arith.select %209, %204, %207 : vector<8x128xi1>, vector<8x128xf32>
    %211 = vector.shape_cast %55 : vector<1x128xi1> to vector<1x128xi1>
    %212 = vector.broadcast %211 : vector<1x128xi1> to vector<8x128xi1>
    %213 = arith.select %212, %203, %210 : vector<8x128xi1>, vector<8x128xf32>
    %c23_i32_86 = arith.constant 23 : i32
    %214 = tpu.dynamic_rotate %31 by %c23_i32_86 dim 0 : vector<24x128xf32>, i32 -> vector<24x128xf32>
    %c1_i32_87 = arith.constant 1 : i32
    %215 = tpu.dynamic_rotate %31 by %c1_i32_87 dim 0 : vector<24x128xf32>, i32 -> vector<24x128xf32>
    %216 = arith.subf %214, %31 : vector<24x128xf32>
    %217 = arith.subf %31, %215 : vector<24x128xf32>
    %218 = arith.subf %214, %215 : vector<24x128xf32>
    %cst_88 = arith.constant 5.000000e-01 : f32
    %219 = vector.broadcast %cst_88 : f32 to vector<24x128xf32>
    %220 = arith.mulf %218, %219 : vector<24x128xf32>
    %221 = vector.shape_cast %69 : vector<24x1xi1> to vector<24x1xi1>
    %222 = vector.broadcast %221 : vector<24x1xi1> to vector<24x128xi1>
    %223 = arith.select %222, %217, %220 : vector<24x128xi1>, vector<24x128xf32>
    %224 = vector.shape_cast %67 : vector<24x1xi1> to vector<24x1xi1>
    %225 = vector.broadcast %224 : vector<24x1xi1> to vector<24x128xi1>
    %226 = arith.select %225, %216, %223 : vector<24x128xi1>, vector<24x128xf32>
    %227 = vector.extract_strided_slice %226 {offsets = [8, 0], sizes = [8, 128], strides = [1, 1]} : vector<24x128xf32> to vector<8x128xf32>
    %c120_i32_89 = arith.constant 120 : i32
    %228 = tpu.dynamic_rotate %16 by %c120_i32_89 dim 1 : vector<8x128xf32>, i32 -> vector<8x128xf32>
    %c8_i32_90 = arith.constant 8 : i32
    %229 = tpu.dynamic_rotate %16 by %c8_i32_90 dim 1 : vector<8x128xf32>, i32 -> vector<8x128xf32>
    %230 = arith.subf %228, %16 : vector<8x128xf32>
    %231 = arith.subf %16, %229 : vector<8x128xf32>
    %232 = arith.subf %228, %229 : vector<8x128xf32>
    %cst_91 = arith.constant 5.000000e-01 : f32
    %233 = vector.broadcast %cst_91 : f32 to vector<8x128xf32>
    %234 = arith.mulf %232, %233 : vector<8x128xf32>
    %235 = vector.shape_cast %61 : vector<1x128xi1> to vector<1x128xi1>
    %236 = vector.broadcast %235 : vector<1x128xi1> to vector<8x128xi1>
    %237 = arith.select %236, %231, %234 : vector<8x128xi1>, vector<8x128xf32>
    %238 = vector.shape_cast %59 : vector<1x128xi1> to vector<1x128xi1>
    %239 = vector.broadcast %238 : vector<1x128xi1> to vector<8x128xi1>
    %240 = arith.select %239, %230, %237 : vector<8x128xi1>, vector<8x128xf32>
    %c120_i32_92 = arith.constant 120 : i32
    %241 = tpu.dynamic_rotate %94 by %c120_i32_92 dim 1 : vector<8x128xf32>, i32 -> vector<8x128xf32>
    %c8_i32_93 = arith.constant 8 : i32
    %242 = tpu.dynamic_rotate %94 by %c8_i32_93 dim 1 : vector<8x128xf32>, i32 -> vector<8x128xf32>
    %243 = arith.subf %241, %94 : vector<8x128xf32>
    %244 = arith.subf %94, %242 : vector<8x128xf32>
    %245 = arith.subf %241, %242 : vector<8x128xf32>
    %cst_94 = arith.constant 5.000000e-01 : f32
    %246 = vector.broadcast %cst_94 : f32 to vector<8x128xf32>
    %247 = arith.mulf %245, %246 : vector<8x128xf32>
    %248 = vector.shape_cast %61 : vector<1x128xi1> to vector<1x128xi1>
    %249 = vector.broadcast %248 : vector<1x128xi1> to vector<8x128xi1>
    %250 = arith.select %249, %244, %247 : vector<8x128xi1>, vector<8x128xf32>
    %251 = vector.shape_cast %59 : vector<1x128xi1> to vector<1x128xi1>
    %252 = vector.broadcast %251 : vector<1x128xi1> to vector<8x128xi1>
    %253 = arith.select %252, %243, %250 : vector<8x128xi1>, vector<8x128xf32>
    %c23_i32_95 = arith.constant 23 : i32
    %254 = tpu.dynamic_rotate %226 by %c23_i32_95 dim 0 : vector<24x128xf32>, i32 -> vector<24x128xf32>
    %c1_i32_96 = arith.constant 1 : i32
    %255 = tpu.dynamic_rotate %226 by %c1_i32_96 dim 0 : vector<24x128xf32>, i32 -> vector<24x128xf32>
    %256 = arith.subf %254, %226 : vector<24x128xf32>
    %257 = arith.subf %226, %255 : vector<24x128xf32>
    %258 = arith.subf %254, %255 : vector<24x128xf32>
    %cst_97 = arith.constant 5.000000e-01 : f32
    %259 = vector.broadcast %cst_97 : f32 to vector<24x128xf32>
    %260 = arith.mulf %258, %259 : vector<24x128xf32>
    %261 = vector.shape_cast %69 : vector<24x1xi1> to vector<24x1xi1>
    %262 = vector.broadcast %261 : vector<24x1xi1> to vector<24x128xi1>
    %263 = arith.select %262, %257, %260 : vector<24x128xi1>, vector<24x128xf32>
    %264 = vector.shape_cast %67 : vector<24x1xi1> to vector<24x1xi1>
    %265 = vector.broadcast %264 : vector<24x1xi1> to vector<24x128xi1>
    %266 = arith.select %265, %256, %263 : vector<24x128xi1>, vector<24x128xf32>
    %267 = vector.extract_strided_slice %266 {offsets = [8, 0], sizes = [8, 128], strides = [1, 1]} : vector<24x128xf32> to vector<8x128xf32>
    %268 = arith.mulf %213, %10 : vector<8x128xf32>
    %269 = arith.mulf %20, %94 : vector<8x128xf32>
    %270 = arith.mulf %18, %227 : vector<8x128xf32>
    %271 = arith.addf %269, %270 : vector<8x128xf32>
    %272 = arith.addf %271, %240 : vector<8x128xf32>
    %273 = arith.mulf %272, %12 : vector<8x128xf32>
    %274 = arith.addf %268, %273 : vector<8x128xf32>
    %275 = arith.addf %253, %267 : vector<8x128xf32>
    %276 = arith.mulf %117, %275 : vector<8x128xf32>
    %277 = arith.subf %274, %276 : vector<8x128xf32>
    %278 = arith.mulf %277, %277 : vector<8x128xf32>
    %279 = vector.shape_cast %278 : vector<8x128xf32> to vector<1x8x128xf32>
    %cst_98 = arith.constant dense<0.000000e+00> : vector<1xf32>
    %280 = vector.multi_reduction <add>, %279, %cst_98 [1, 2] : vector<1x8x128xf32> to vector<1xf32>
    %281 = vector.shape_cast %280 : vector<1xf32> to vector<1x1x1xf32>
    %282 = vector.extract %281[0, 0, 0] : f32 from vector<1x1x1xf32>
    %283 = arith.addf %200, %282 : f32
    %c1_i32_99 = arith.constant 1 : i32
    %284 = tpu.dynamic_rotate %2 by %c1_i32_99 dim 1 : vector<8x128xf32>, i32 -> vector<8x128xf32>
    %285 = arith.subf %284, %2 : vector<8x128xf32>
    %c0_100 = arith.constant 0 : index
    %c0_101 = arith.constant 0 : index
    %c0_102 = arith.constant 0 : index
    %286 = vector.load %arg16[%c0_100, %c0_101, %c0_102] : memref<1x8x16xf32, #tpu.memory_space<vmem>>, vector<1x8x16xf32>
    %287 = vector.shape_cast %286 : vector<1x8x16xf32> to vector<8x16xf32>
    %c0_103 = arith.constant 0 : index
    %c0_104 = arith.constant 0 : index
    %c0_105 = arith.constant 0 : index
    %288 = vector.load %arg17[%c0_103, %c0_104, %c0_105] : memref<1x8x16xf32, #tpu.memory_space<vmem>>, vector<1x8x16xf32>
    %289 = vector.shape_cast %288 : vector<1x8x16xf32> to vector<8x16xf32>
    %290 = arith.subf %287, %289 : vector<8x16xf32>
    %291 = arith.mulf %285, %285 : vector<8x128xf32>
    %cst_106 = arith.constant 0.000000e+00 : f32
    %292 = vector.shape_cast %55 : vector<1x128xi1> to vector<1x128xi1>
    %293 = vector.broadcast %292 : vector<1x128xi1> to vector<8x128xi1>
    %294 = vector.broadcast %cst_106 : f32 to vector<8x128xf32>
    %295 = arith.select %293, %294, %291 : vector<8x128xi1>, vector<8x128xf32>
    %296 = vector.shape_cast %295 : vector<8x128xf32> to vector<1x8x128xf32>
    %cst_107 = arith.constant dense<0.000000e+00> : vector<1xf32>
    %297 = vector.multi_reduction <add>, %296, %cst_107 [1, 2] : vector<1x8x128xf32> to vector<1xf32>
    %298 = vector.shape_cast %297 : vector<1xf32> to vector<1x1x1xf32>
    %299 = vector.extract %298[0, 0, 0] : f32 from vector<1x1x1xf32>
    %300 = arith.mulf %290, %290 : vector<8x16xf32>
    %301 = vector.shape_cast %300 : vector<8x16xf32> to vector<1x8x16xf32>
    %cst_108 = arith.constant dense<0.000000e+00> : vector<1xf32>
    %302 = vector.multi_reduction <add>, %301, %cst_108 [1, 2] : vector<1x8x16xf32> to vector<1xf32>
    %303 = vector.shape_cast %302 : vector<1xf32> to vector<1x1x1xf32>
    %304 = vector.extract %303[0, 0, 0] : f32 from vector<1x1x1xf32>
    %305 = arith.addf %299, %304 : f32
    %306 = arith.mulf %8, %10 : vector<8x128xf32>
    %307 = arith.subf %306, %2 : vector<8x128xf32>
    %308 = arith.mulf %307, %307 : vector<8x128xf32>
    %309 = vector.shape_cast %308 : vector<8x128xf32> to vector<1x8x128xf32>
    %cst_109 = arith.constant dense<0.000000e+00> : vector<1xf32>
    %310 = vector.multi_reduction <add>, %309, %cst_109 [1, 2] : vector<1x8x128xf32> to vector<1xf32>
    %311 = vector.shape_cast %310 : vector<1xf32> to vector<1x1x1xf32>
    %312 = vector.extract %311[0, 0, 0] : f32 from vector<1x1x1xf32>
    %313 = tpu.iota {dimensions = array<i32: 0>} : vector<8x128xi32>
    %c0_i32_110 = arith.constant 0 : i32
    %314 = vector.broadcast %c0_i32_110 : i32 to vector<8x128xi32>
    %315 = arith.cmpi eq, %313, %314 : vector<8x128xi32>
    %cst_111 = arith.constant 0.000000e+00 : f32
    %316 = vector.broadcast %76 : f32 to vector<8x128xf32>
    %317 = vector.broadcast %cst_111 : f32 to vector<8x128xf32>
    %318 = arith.select %315, %316, %317 : vector<8x128xi1>, vector<8x128xf32>
    %c1_i32_112 = arith.constant 1 : i32
    %319 = vector.broadcast %c1_i32_112 : i32 to vector<8x128xi32>
    %320 = arith.cmpi eq, %313, %319 : vector<8x128xi32>
    %cst_113 = arith.constant 0.000000e+00 : f32
    %321 = vector.broadcast %81 : f32 to vector<8x128xf32>
    %322 = vector.broadcast %cst_113 : f32 to vector<8x128xf32>
    %323 = arith.select %320, %321, %322 : vector<8x128xi1>, vector<8x128xf32>
    %324 = arith.addf %318, %323 : vector<8x128xf32>
    %c2_i32 = arith.constant 2 : i32
    %325 = vector.broadcast %c2_i32 : i32 to vector<8x128xi32>
    %326 = arith.cmpi eq, %313, %325 : vector<8x128xi32>
    %cst_114 = arith.constant 0.000000e+00 : f32
    %327 = vector.broadcast %283 : f32 to vector<8x128xf32>
    %328 = vector.broadcast %cst_114 : f32 to vector<8x128xf32>
    %329 = arith.select %326, %327, %328 : vector<8x128xi1>, vector<8x128xf32>
    %330 = arith.addf %324, %329 : vector<8x128xf32>
    %c3_i32 = arith.constant 3 : i32
    %331 = vector.broadcast %c3_i32 : i32 to vector<8x128xi32>
    %332 = arith.cmpi eq, %313, %331 : vector<8x128xi32>
    %cst_115 = arith.constant 0.000000e+00 : f32
    %333 = vector.broadcast %305 : f32 to vector<8x128xf32>
    %334 = vector.broadcast %cst_115 : f32 to vector<8x128xf32>
    %335 = arith.select %332, %333, %334 : vector<8x128xi1>, vector<8x128xf32>
    %336 = arith.addf %330, %335 : vector<8x128xf32>
    %c4_i32 = arith.constant 4 : i32
    %337 = vector.broadcast %c4_i32 : i32 to vector<8x128xi32>
    %338 = arith.cmpi eq, %313, %337 : vector<8x128xi32>
    %cst_116 = arith.constant 0.000000e+00 : f32
    %339 = vector.broadcast %312 : f32 to vector<8x128xf32>
    %340 = vector.broadcast %cst_116 : f32 to vector<8x128xf32>
    %341 = arith.select %338, %339, %340 : vector<8x128xi1>, vector<8x128xf32>
    %342 = arith.addf %336, %341 : vector<8x128xf32>
    %c0_i32_117 = arith.constant 0 : i32
    %343 = arith.cmpi eq, %arg1, %c0_i32_117 : i32
    %344 = arith.extui %343 : i1 to i32
    %c0_i32_118 = arith.constant 0 : i32
    %345 = arith.cmpi ne, %344, %c0_i32_118 : i32
    scf.if %345 {
      %c0_121 = arith.constant 0 : index
      %c0_122 = arith.constant 0 : index
      %c0_123 = arith.constant 0 : index
      %349 = vector.load %arg18[%c0_121, %c0_122, %c0_123] : memref<1x8x128xf32, #tpu.memory_space<vmem>>, vector<1x8x128xf32>
      %350 = vector.shape_cast %349 : vector<1x8x128xf32> to vector<8x128xf32>
      %351 = vector.shape_cast %342 : vector<8x128xf32> to vector<1x8x128xf32>
      tpu.vector_store %arg18[%c0_121, %c0_122, %c0_123], %351 {strides = array<i32>} : memref<1x8x128xf32, #tpu.memory_space<vmem>>, vector<1x8x128xf32>,
    } else {
    }
    %c0_i32_119 = arith.constant 0 : i32
    %346 = arith.cmpi ne, %arg1, %c0_i32_119 : i32
    %347 = arith.extui %346 : i1 to i32
    %c0_i32_120 = arith.constant 0 : i32
    %348 = arith.cmpi ne, %347, %c0_i32_120 : i32
    scf.if %348 {
      %c0_121 = arith.constant 0 : index
      %c0_122 = arith.constant 0 : index
      %c0_123 = arith.constant 0 : index
      %349 = vector.load %arg18[%c0_121, %c0_122, %c0_123] : memref<1x8x128xf32, #tpu.memory_space<vmem>>, vector<1x8x128xf32>
      %350 = vector.shape_cast %349 : vector<1x8x128xf32> to vector<8x128xf32>
      %351 = arith.addf %350, %342 : vector<8x128xf32>
      %c0_124 = arith.constant 0 : index
      %c0_125 = arith.constant 0 : index
      %c0_126 = arith.constant 0 : index
      %352 = vector.load %arg18[%c0_124, %c0_125, %c0_126] : memref<1x8x128xf32, #tpu.memory_space<vmem>>, vector<1x8x128xf32>
      %353 = vector.shape_cast %352 : vector<1x8x128xf32> to vector<8x128xf32>
      %354 = vector.shape_cast %351 : vector<8x128xf32> to vector<1x8x128xf32>
      tpu.vector_store %arg18[%c0_124, %c0_125, %c0_126], %354 {strides = array<i32>} : memref<1x8x128xf32, #tpu.memory_space<vmem>>, vector<1x8x128xf32>,
    } else {
    }
    return
  }
  func.func @transform_0(%arg0: i32, %arg1: i32) -> i32 {
    %c0_i32 = arith.constant 0 : i32
    %c0_i32_0 = arith.constant 0 : i32
    return %c0_i32 : i32
  }
  func.func @transform_1(%arg0: i32, %arg1: i32) -> (i32, i32, i32) {
    %c0_i32 = arith.constant 0 : i32
    %c0_i32_0 = arith.constant 0 : i32
    return %arg0, %arg1, %c0_i32 : i32, i32, i32
  }
  func.func @transform_2(%arg0: i32, %arg1: i32) -> (i32, i32, i32) {
    %c0_i32 = arith.constant 0 : i32
    %c0_i32_0 = arith.constant 0 : i32
    return %arg0, %arg1, %c0_i32 : i32, i32, i32
  }
  func.func @transform_3(%arg0: i32, %arg1: i32) -> (i32, i32, i32) {
    %c0_i32 = arith.constant 0 : i32
    %c0_i32_0 = arith.constant 0 : i32
    return %arg0, %arg1, %c0_i32 : i32, i32, i32
  }
  func.func @transform_4(%arg0: i32, %arg1: i32) -> (i32, i32, i32) {
    %c0_i32 = arith.constant 0 : i32
    %c0_i32_0 = arith.constant 0 : i32
    return %arg0, %arg1, %c0_i32 : i32, i32, i32
  }
  func.func @transform_5(%arg0: i32, %arg1: i32) -> (i32, i32, i32) {
    %c0_i32 = arith.constant 0 : i32
    %c0_i32_0 = arith.constant 0 : i32
    return %arg0, %arg1, %c0_i32 : i32, i32, i32
  }
  func.func @transform_6(%arg0: i32, %arg1: i32) -> (i32, i32, i32) {
    %c1_i32 = arith.constant 1 : i32
    %0 = arith.muli %arg1, %c1_i32 : i32
    %c1_i32_0 = arith.constant 1 : i32
    %1 = arith.subi %0, %c1_i32_0 : i32
    %c0_i32 = arith.constant 0 : i32
    %2 = arith.maxsi %1, %c0_i32 : i32
    %c0_i32_1 = arith.constant 0 : i32
    %c0_i32_2 = arith.constant 0 : i32
    return %arg0, %2, %c0_i32_1 : i32, i32, i32
  }
  func.func @transform_7(%arg0: i32, %arg1: i32) -> (i32, i32, i32) {
    %c1_i32 = arith.constant 1 : i32
    %0 = arith.addi %arg1, %c1_i32 : i32
    %c1_i32_0 = arith.constant 1 : i32
    %1 = arith.muli %0, %c1_i32_0 : i32
    %c1_i32_1 = arith.constant 1 : i32
    %2 = arith.minsi %1, %c1_i32_1 : i32
    %c0_i32 = arith.constant 0 : i32
    %c0_i32_2 = arith.constant 0 : i32
    return %arg0, %2, %c0_i32 : i32, i32, i32
  }
  func.func @transform_8(%arg0: i32, %arg1: i32) -> (i32, i32, i32, i32) {
    %c0_i32 = arith.constant 0 : i32
    %c0_i32_0 = arith.constant 0 : i32
    %c0_i32_1 = arith.constant 0 : i32
    return %arg0, %c0_i32, %arg1, %c0_i32_0 : i32, i32, i32, i32
  }
  func.func @transform_9(%arg0: i32, %arg1: i32) -> (i32, i32, i32, i32) {
    %c1_i32 = arith.constant 1 : i32
    %0 = arith.muli %arg1, %c1_i32 : i32
    %c1_i32_0 = arith.constant 1 : i32
    %1 = arith.subi %0, %c1_i32_0 : i32
    %c0_i32 = arith.constant 0 : i32
    %2 = arith.maxsi %1, %c0_i32 : i32
    %c0_i32_1 = arith.constant 0 : i32
    %c0_i32_2 = arith.constant 0 : i32
    %c0_i32_3 = arith.constant 0 : i32
    return %arg0, %c0_i32_1, %2, %c0_i32_2 : i32, i32, i32, i32
  }
  func.func @transform_10(%arg0: i32, %arg1: i32) -> (i32, i32, i32, i32) {
    %c1_i32 = arith.constant 1 : i32
    %0 = arith.addi %arg1, %c1_i32 : i32
    %c1_i32_0 = arith.constant 1 : i32
    %1 = arith.muli %0, %c1_i32_0 : i32
    %c1_i32_1 = arith.constant 1 : i32
    %2 = arith.minsi %1, %c1_i32_1 : i32
    %c0_i32 = arith.constant 0 : i32
    %c0_i32_2 = arith.constant 0 : i32
    %c0_i32_3 = arith.constant 0 : i32
    return %arg0, %c0_i32, %2, %c0_i32_2 : i32, i32, i32, i32
  }
  func.func @transform_11(%arg0: i32, %arg1: i32) -> (i32, i32, i32) {
    %c0_i32 = arith.constant 0 : i32
    %c0_i32_0 = arith.constant 0 : i32
    return %arg0, %arg1, %c0_i32 : i32, i32, i32
  }
  func.func @transform_12(%arg0: i32, %arg1: i32) -> (i32, i32, i32) {
    %c0_i32 = arith.constant 0 : i32
    %c0_i32_0 = arith.constant 0 : i32
    return %arg0, %arg1, %c0_i32 : i32, i32, i32
  }
  func.func @transform_13(%arg0: i32, %arg1: i32) -> (i32, i32, i32) {
    %c0_i32 = arith.constant 0 : i32
    %c0_i32_0 = arith.constant 0 : i32
    return %arg0, %arg1, %c0_i32 : i32, i32, i32
  }
  func.func @transform_14(%arg0: i32, %arg1: i32) -> (i32, i32, i32) {
    %c0_i32 = arith.constant 0 : i32
    %c0_i32_0 = arith.constant 0 : i32
    return %arg0, %arg1, %c0_i32 : i32, i32, i32
  }
  func.func @transform_15(%arg0: i32, %arg1: i32) -> (i32, i32, i32) {
    %c0_i32 = arith.constant 0 : i32
    %c0_i32_0 = arith.constant 0 : i32
    return %arg0, %arg1, %c0_i32 : i32, i32, i32
  }
  func.func @transform_16(%arg0: i32, %arg1: i32) -> (i32, i32, i32) {
    %c0_i32 = arith.constant 0 : i32
    %c0_i32_0 = arith.constant 0 : i32
    %c0_i32_1 = arith.constant 0 : i32
    return %arg0, %c0_i32, %c0_i32_0 : i32, i32, i32
  }
}

</mosaic_0001>

<llo_original>
// kernel: loss_forward.1
$region0: #{loss_forward.1}
  #allocation0 [shape = 'u32[]', space=smem, size = 0x4, offset = 0x4, fixed_abs, tag = 'smem constant byte address 0x4 - core index']
  #allocation1 [shape = 'u32[72,128]{1,0:T(1,128)}', space=vmem, size = 0x9000, scoped, tag = 'internal scratch']
  #allocation2 [shape = 'f32[1]{0:T(128)S(6)}', space=smem, size = 0x200, scoped, tag = 'scoped memory for loss_forward.1']
  %s0 = inlined_call_operand.<no memory space> [shape: f32[1], index: 0, kind: input, shape index: {}]
  %s1 = inlined_call_operand.vmem [shape: f32[2,16,128], index: 1, kind: input, shape index: {}]
  %s2 = inlined_call_operand.vmem [shape: f32[2,16,128], index: 2, kind: input, shape index: {}]
  %s3 = inlined_call_operand.vmem [shape: f32[2,16,128], index: 3, kind: input, shape index: {}]
  %s4 = inlined_call_operand.vmem [shape: f32[2,16,128], index: 4, kind: input, shape index: {}]
  %s5 = inlined_call_operand.vmem [shape: f32[2,16,128], index: 5, kind: input, shape index: {}, may-alias: {5,6,7}]
  %s6 = inlined_call_operand.vmem [shape: f32[2,16,128], index: 6, kind: input, shape index: {}, may-alias: {5,6,7}]
  %s7 = inlined_call_operand.vmem [shape: f32[2,16,128], index: 7, kind: input, shape index: {}, may-alias: {5,6,7}]
  %s8 = inlined_call_operand.vmem [shape: f32[2,2,16,128], index: 8, kind: input, shape index: {}, may-alias: {8,9,10}]
  %s9 = inlined_call_operand.vmem [shape: f32[2,2,16,128], index: 9, kind: input, shape index: {}, may-alias: {8,9,10}]
  %s10 = inlined_call_operand.vmem [shape: f32[2,2,16,128], index: 10, kind: input, shape index: {}, may-alias: {8,9,10}]
  %s11 = inlined_call_operand.vmem [shape: f32[2,16,128], index: 11, kind: input, shape index: {}]
  %s12 = inlined_call_operand.vmem [shape: f32[2,16,128], index: 12, kind: input, shape index: {}]
  %s13 = inlined_call_operand.vmem [shape: f32[2,16,128], index: 13, kind: input, shape index: {}]
  %s14 = inlined_call_operand.vmem [shape: f32[2,16,16], index: 14, kind: input, shape index: {}]
  %s15 = inlined_call_operand.vmem [shape: f32[2,16,16], index: 15, kind: input, shape index: {}]
  %s16 = inlined_call_operand.vmem [shape: f32[2,8,128], index: 16, kind: output, shape index: {}]
  %s17 = sld [smem:[#allocation0]]
  $region219: #{loss_forward.1} parent=0
    _
  %s19 = ssub.s32 1, %s17
  %s20 = scalar_select 0, %s19, %s17
  %21 = sst [smem:[#allocation2]] %s0
  $region1: #{loss_forward.1} parent=0
    #allocation3 [shape = 'u8[16384]{0}', space=vmem, size = 0x4000, scoped, tag = 'input window, operand 8']
    #allocation4 [shape = 'u8[16384]{0}', space=vmem, size = 0x4000, scoped, tag = 'input window, operand 9']
    #allocation5 [shape = 'u8[16384]{0}', space=vmem, size = 0x4000, scoped, tag = 'input window, operand 10']
    loop: start=0, step=1, limit=6
    $region2: #{loss_forward.1} parent=1 // loop_pre_header
      _
    $region3: #{loss_forward.1} parent=1 // loop_header
      %s23 = sphi 0, %s27
      %p24 = scmp.ge.s32.totalorder %s23, 6
      %s30 = sphi 0, %s42
      %s31 = sphi 0, %s38
      %s32 = sphi 0, %s30
      %s33 = sphi 0, %s31
      %s34 = sphi 0, %s32
      %s35 = sphi 0, %s33
      %s43 = sphi 0, %s43
      %s45 = sphi 0, %s43
      %s46 = sphi 0, %s45
      %s60 = sphi 0, %s46
      %s68 = sphi 0, %s70
      %s71 = sphi 0, %s68
      %s72 = sphi 0, %s71
      %s88 = sphi 0, %s72
      %s96 = sphi 0, %s98
      %s99 = sphi 0, %s96
      %s100 = sphi 0, %s99
      %s116 = sphi 0, %s100
      %s124 = sphi 0, %s126
      %s127 = sphi 0, %s124
      %s128 = sphi 0, %s127
      %s144 = sphi 0, %s128
      %s152 = sphi 0, %s154
      %s155 = sphi 0, %s152
      %s156 = sphi 0, %s155
      %s172 = sphi 0, %s156
      %s180 = sphi 0, %s182
      %s183 = sphi 0, %s180
      %s184 = sphi 0, %s183
      %s200 = sphi 0, %s184
      %s214 = sphi 0, %s216
      %s217 = sphi 0, %s214
      %s218 = sphi 0, %s217
      %s234 = sphi 0, %s218
      %s248 = sphi 0, %s250
      %s251 = sphi 0, %s248
      %s252 = sphi 0, %s251
      %s268 = sphi 0, %s252
      %s276 = sphi 0, %s278
      %s279 = sphi 0, %s276
      %s280 = sphi 0, %s279
      %s296 = sphi 0, %s280
      %s310 = sphi 0, %s312
      %s313 = sphi 0, %s310
      %s314 = sphi 0, %s313
      %s330 = sphi 0, %s314
      %s344 = sphi 0, %s346
      %s347 = sphi 0, %s344
      %s348 = sphi 0, %s347
      %s364 = sphi 0, %s348
      %s372 = sphi 0, %s374
      %s375 = sphi 0, %s372
      %s376 = sphi 0, %s375
      %s392 = sphi 0, %s376
      %s400 = sphi 0, %s402
      %s403 = sphi 0, %s400
      %s404 = sphi 0, %s403
      %s420 = sphi 0, %s404
      %s428 = sphi 0, %s430
      %s431 = sphi 0, %s428
      %s432 = sphi 0, %s431
      %s448 = sphi 0, %s432
      %s456 = sphi 0, %s458
      %s459 = sphi 0, %s456
      %s460 = sphi 0, %s459
      %s476 = sphi 0, %s460
      %s484 = sphi 0, %s486
      %s487 = sphi 0, %s484
      %s488 = sphi 0, %s487
      %s504 = sphi 0, %s488
      %s510 = sphi 0, %s512
      %s513 = sphi 0, %s510
      %s514 = sphi 0, %s513
      %s530 = sphi 0, %s514
    $region4: #{loss_forward.1} parent=1 // loop_header_branch
      %26 = sbr.rel (%p24) target = $region8
    $region5: #{loss_forward.1} parent=1 // loop_body
      %s28 = ssub.s32 %s23, 1
      %s29 = ssub.s32 %s23, 2
      %s36 = sadd.s32 1, %s31
      %p37 = scmp.ge.s32.totalorder %s36, 2
      %s38 = scalar_select %p37, 0, %s36
      %s39 = sadd.s32 1, %s30
      %s40 = scalar_select %p37, %s39, %s30
      %p41 = scmp.ge.s32.totalorder %s40, 2
      %s42 = scalar_select %p41, 0, %s40
      %s44 = sadd.s32 %s43, 1
      %p47 = scmp.eq.s32.totalorder %s23, 3
      %p48 = scmp.ne.s32.totalorder %s43, %s45
      %p49 = scmp.eq.s32.totalorder %s23, 0
      %p50 = por %p48, %p49
      %p51 = scmp.ne.s32.totalorder %s43, %s45
      %p52 = scmp.eq.s32.totalorder %s28, 3
      %p53 = por %p51, %p52
      %p54 = scmp.ne.s32.totalorder %s45, %s46
      %p55 = scmp.eq.s32.totalorder %s28, 0
      %p56 = por %p54, %p55
      %p57 = scmp.ne.s32.totalorder %s45, %s46
      %p58 = scmp.eq.s32.totalorder %s29, 3
      %p59 = por %p57, %p58
      %p61 = scmp.ne.s32.totalorder %s46, %s60
      %p62 = scmp.eq.s32.totalorder %s29, 0
      %p63 = por %p61, %p62
      %s64 = ssub.s32 %s30, %s42
      %s65 = ssub.s32 %s31, %s38
      %s66 = sor.u32 %s64, %s65
      %p67 = scmp.eq.s32.totalorder %s66, 0
      %s69 = sadd.s32 %s68, 1
      %s70 = scalar_select %p67, %s68, %s69
      %p73 = pneg %p67
      %p74 = scmp.eq.s32.totalorder %s23, 3
      %p75 = por %p73, %p74
      %p76 = scmp.ne.s32.totalorder %s68, %s71
      %p77 = scmp.eq.s32.totalorder %s23, 0
      %p78 = por %p76, %p77
      %p79 = scmp.ne.s32.totalorder %s68, %s71
      %p80 = scmp.eq.s32.totalorder %s28, 3
      %p81 = por %p79, %p80
      %p82 = scmp.ne.s32.totalorder %s71, %s72
      %p83 = scmp.eq.s32.totalorder %s28, 0
      %p84 = por %p82, %p83
      %p85 = scmp.ne.s32.totalorder %s71, %s72
      %p86 = scmp.eq.s32.totalorder %s29, 3
      %p87 = por %p85, %p86
      %p89 = scmp.ne.s32.totalorder %s72, %s88
      %p90 = scmp.eq.s32.totalorder %s29, 0
      %p91 = por %p89, %p90
      %s92 = ssub.s32 %s30, %s42
      %s93 = ssub.s32 %s31, %s38
      %s94 = sor.u32 %s92, %s93
      %p95 = scmp.eq.s32.totalorder %s94, 0
      %s97 = sadd.s32 %s96, 1
      %s98 = scalar_select %p95, %s96, %s97
      %p101 = pneg %p95
      %p102 = scmp.eq.s32.totalorder %s23, 3
      %p103 = por %p101, %p102
      %p104 = scmp.ne.s32.totalorder %s96, %s99
      %p105 = scmp.eq.s32.totalorder %s23, 0
      %p106 = por %p104, %p105
      %p107 = scmp.ne.s32.totalorder %s96, %s99
      %p108 = scmp.eq.s32.totalorder %s28, 3
      %p109 = por %p107, %p108
      %p110 = scmp.ne.s32.totalorder %s99, %s100
      %p111 = scmp.eq.s32.totalorder %s28, 0
      %p112 = por %p110, %p111
      %p113 = scmp.ne.s32.totalorder %s99, %s100
      %p114 = scmp.eq.s32.totalorder %s29, 3
      %p115 = por %p113, %p114
      %p117 = scmp.ne.s32.totalorder %s100, %s116
      %p118 = scmp.eq.s32.totalorder %s29, 0
      %p119 = por %p117, %p118
      %s120 = ssub.s32 %s30, %s42
      %s121 = ssub.s32 %s31, %s38
      %s122 = sor.u32 %s120, %s121
      %p123 = scmp.eq.s32.totalorder %s122, 0
      %s125 = sadd.s32 %s124, 1
      %s126 = scalar_select %p123, %s124, %s125
      %p129 = pneg %p123
      %p130 = scmp.eq.s32.totalorder %s23, 3
      %p131 = por %p129, %p130
      %p132 = scmp.ne.s32.totalorder %s124, %s127
      %p133 = scmp.eq.s32.totalorder %s23, 0
      %p134 = por %p132, %p133
      %p135 = scmp.ne.s32.totalorder %s124, %s127
      %p136 = scmp.eq.s32.totalorder %s28, 3
      %p137 = por %p135, %p136
      %p138 = scmp.ne.s32.totalorder %s127, %s128
      %p139 = scmp.eq.s32.totalorder %s28, 0
      %p140 = por %p138, %p139
      %p141 = scmp.ne.s32.totalorder %s127, %s128
      %p142 = scmp.eq.s32.totalorder %s29, 3
      %p143 = por %p141, %p142
      %p145 = scmp.ne.s32.totalorder %s128, %s144
      %p146 = scmp.eq.s32.totalorder %s29, 0
      %p147 = por %p145, %p146
      %s148 = ssub.s32 %s30, %s42
      %s149 = ssub.s32 %s31, %s38
      %s150 = sor.u32 %s148, %s149
      %p151 = scmp.eq.s32.totalorder %s150, 0
      %s153 = sadd.s32 %s152, 1
      %s154 = scalar_select %p151, %s152, %s153
      %p157 = pneg %p151
      %p158 = scmp.eq.s32.totalorder %s23, 3
      %p159 = por %p157, %p158
      %p160 = scmp.ne.s32.totalorder %s152, %s155
      %p161 = scmp.eq.s32.totalorder %s23, 0
      %p162 = por %p160, %p161
      %p163 = scmp.ne.s32.totalorder %s152, %s155
      %p164 = scmp.eq.s32.totalorder %s28, 3
      %p165 = por %p163, %p164
      %p166 = scmp.ne.s32.totalorder %s155, %s156
      %p167 = scmp.eq.s32.totalorder %s28, 0
      %p168 = por %p166, %p167
      %p169 = scmp.ne.s32.totalorder %s155, %s156
      %p170 = scmp.eq.s32.totalorder %s29, 3
      %p171 = por %p169, %p170
      %p173 = scmp.ne.s32.totalorder %s156, %s172
      %p174 = scmp.eq.s32.totalorder %s29, 0
      %p175 = por %p173, %p174
      %s176 = ssub.s32 %s30, %s42
      %s177 = ssub.s32 %s31, %s38
      %s178 = sor.u32 %s176, %s177
      %p179 = scmp.eq.s32.totalorder %s178, 0
      %s181 = sadd.s32 %s180, 1
      %s182 = scalar_select %p179, %s180, %s181
      %p185 = pneg %p179
      %p186 = scmp.eq.s32.totalorder %s23, 3
      %p187 = por %p185, %p186
      %p188 = scmp.ne.s32.totalorder %s180, %s183
      %p189 = scmp.eq.s32.totalorder %s23, 0
      %p190 = por %p188, %p189
      %p191 = scmp.ne.s32.totalorder %s180, %s183
      %p192 = scmp.eq.s32.totalorder %s28, 3
      %p193 = por %p191, %p192
      %p194 = scmp.ne.s32.totalorder %s183, %s184
      %p195 = scmp.eq.s32.totalorder %s28, 0
      %p196 = por %p194, %p195
      %p197 = scmp.ne.s32.totalorder %s183, %s184
      %p198 = scmp.eq.s32.totalorder %s29, 3
      %p199 = por %p197, %p198
      %p201 = scmp.ne.s32.totalorder %s184, %s200
      %p202 = scmp.eq.s32.totalorder %s29, 0
      %p203 = por %p201, %p202
      %s204 = ssub.s32 %s31, 1
      %p205 = scmp.gt.s32.totalorder %s204, 0
      %s206 = scalar_select %p205, %s204, 0
      %s207 = ssub.s32 %s38, 1
      %p208 = scmp.gt.s32.totalorder %s207, 0
      %s209 = scalar_select %p208, %s207, 0
      %s210 = ssub.s32 %s30, %s42
      %s211 = ssub.s32 %s206, %s209
      %s212 = sor.u32 %s210, %s211
      %p213 = scmp.eq.s32.totalorder %s212, 0
      %s215 = sadd.s32 %s214, 1
      %s216 = scalar_select %p213, %s214, %s215
      %p219 = pneg %p213
      %p220 = scmp.eq.s32.totalorder %s23, 3
      %p221 = por %p219, %p220
      %p222 = scmp.ne.s32.totalorder %s214, %s217
      %p223 = scmp.eq.s32.totalorder %s23, 0
      %p224 = por %p222, %p223
      %p225 = scmp.ne.s32.totalorder %s214, %s217
      %p226 = scmp.eq.s32.totalorder %s28, 3
      %p227 = por %p225, %p226
      %p228 = scmp.ne.s32.totalorder %s217, %s218
      %p229 = scmp.eq.s32.totalorder %s28, 0
      %p230 = por %p228, %p229
      %p231 = scmp.ne.s32.totalorder %s217, %s218
      %p232 = scmp.eq.s32.totalorder %s29, 3
      %p233 = por %p231, %p232
      %p235 = scmp.ne.s32.totalorder %s218, %s234
      %p236 = scmp.eq.s32.totalorder %s29, 0
      %p237 = por %p235, %p236
      %s238 = sadd.s32 %s31, 1
      %p239 = scmp.lt.s32.totalorder %s238, 1
      %s240 = scalar_select %p239, %s238, 1
      %s241 = sadd.s32 %s38, 1
      %p242 = scmp.lt.s32.totalorder %s241, 1
      %s243 = scalar_select %p242, %s241, 1
      %s244 = ssub.s32 %s30, %s42
      %s245 = ssub.s32 %s240, %s243
      %s246 = sor.u32 %s244, %s245
      %p247 = scmp.eq.s32.totalorder %s246, 0
      %s249 = sadd.s32 %s248, 1
      %s250 = scalar_select %p247, %s248, %s249
      %p253 = pneg %p247
      %p254 = scmp.eq.s32.totalorder %s23, 3
      %p255 = por %p253, %p254
      %p256 = scmp.ne.s32.totalorder %s248, %s251
      %p257 = scmp.eq.s32.totalorder %s23, 0
      %p258 = por %p256, %p257
      %p259 = scmp.ne.s32.totalorder %s248, %s251
      %p260 = scmp.eq.s32.totalorder %s28, 3
      %p261 = por %p259, %p260
      %p262 = scmp.ne.s32.totalorder %s251, %s252
      %p263 = scmp.eq.s32.totalorder %s28, 0
      %p264 = por %p262, %p263
      %p265 = scmp.ne.s32.totalorder %s251, %s252
      %p266 = scmp.eq.s32.totalorder %s29, 3
      %p267 = por %p265, %p266
      %p269 = scmp.ne.s32.totalorder %s252, %s268
      %p270 = scmp.eq.s32.totalorder %s29, 0
      %p271 = por %p269, %p270
      %s272 = ssub.s32 %s30, %s42
      %s273 = ssub.s32 %s31, %s38
      %s274 = sor.u32 %s272, %s273
      %p275 = scmp.eq.s32.totalorder %s274, 0
      %s277 = sadd.s32 %s276, 1
      %s278 = scalar_select %p275, %s276, %s277
      %p281 = pneg %p275
      %p282 = scmp.eq.s32.totalorder %s23, 3
      %p283 = por %p281, %p282
      %p284 = scmp.ne.s32.totalorder %s276, %s279
      %p285 = scmp.eq.s32.totalorder %s23, 0
      %p286 = por %p284, %p285
      %p287 = scmp.ne.s32.totalorder %s276, %s279
      %p288 = scmp.eq.s32.totalorder %s28, 3
      %p289 = por %p287, %p288
      %p290 = scmp.ne.s32.totalorder %s279, %s280
      %p291 = scmp.eq.s32.totalorder %s28, 0
      %p292 = por %p290, %p291
      %p293 = scmp.ne.s32.totalorder %s279, %s280
      %p294 = scmp.eq.s32.totalorder %s29, 3
      %p295 = por %p293, %p294
      %p297 = scmp.ne.s32.totalorder %s280, %s296
      %p298 = scmp.eq.s32.totalorder %s29, 0
      %p299 = por %p297, %p298
      %s300 = ssub.s32 %s31, 1
      %p301 = scmp.gt.s32.totalorder %s300, 0
      %s302 = scalar_select %p301, %s300, 0
      %s303 = ssub.s32 %s38, 1
      %p304 = scmp.gt.s32.totalorder %s303, 0
      %s305 = scalar_select %p304, %s303, 0
      %s306 = ssub.s32 %s30, %s42
      %s307 = ssub.s32 %s302, %s305
      %s308 = sor.u32 %s306, %s307
      %p309 = scmp.eq.s32.totalorder %s308, 0
      %s311 = sadd.s32 %s310, 1
      %s312 = scalar_select %p309, %s310, %s311
      %p315 = pneg %p309
      %p316 = scmp.eq.s32.totalorder %s23, 3
      %p317 = por %p315, %p316
      %p318 = scmp.ne.s32.totalorder %s310, %s313
      %p319 = scmp.eq.s32.totalorder %s23, 0
      %p320 = por %p318, %p319
      %p321 = scmp.ne.s32.totalorder %s310, %s313
      %p322 = scmp.eq.s32.totalorder %s28, 3
      %p323 = por %p321, %p322
      %p324 = scmp.ne.s32.totalorder %s313, %s314
      %p325 = scmp.eq.s32.totalorder %s28, 0
      %p326 = por %p324, %p325
      %p327 = scmp.ne.s32.totalorder %s313, %s314
      %p328 = scmp.eq.s32.totalorder %s29, 3
      %p329 = por %p327, %p328
      %p331 = scmp.ne.s32.totalorder %s314, %s330
      %p332 = scmp.eq.s32.totalorder %s29, 0
      %p333 = por %p331, %p332
      %s334 = sadd.s32 %s31, 1
      %p335 = scmp.lt.s32.totalorder %s334, 1
      %s336 = scalar_select %p335, %s334, 1
      %s337 = sadd.s32 %s38, 1
      %p338 = scmp.lt.s32.totalorder %s337, 1
      %s339 = scalar_select %p338, %s337, 1
      %s340 = ssub.s32 %s30, %s42
      %s341 = ssub.s32 %s336, %s339
      %s342 = sor.u32 %s340, %s341
      %p343 = scmp.eq.s32.totalorder %s342, 0
      %s345 = sadd.s32 %s344, 1
      %s346 = scalar_select %p343, %s344, %s345
      %p349 = pneg %p343
      %p350 = scmp.eq.s32.totalorder %s23, 3
      %p351 = por %p349, %p350
      %p352 = scmp.ne.s32.totalorder %s344, %s347
      %p353 = scmp.eq.s32.totalorder %s23, 0
      %p354 = por %p352, %p353
      %p355 = scmp.ne.s32.totalorder %s344, %s347
      %p356 = scmp.eq.s32.totalorder %s28, 3
      %p357 = por %p355, %p356
      %p358 = scmp.ne.s32.totalorder %s347, %s348
      %p359 = scmp.eq.s32.totalorder %s28, 0
      %p360 = por %p358, %p359
      %p361 = scmp.ne.s32.totalorder %s347, %s348
      %p362 = scmp.eq.s32.totalorder %s29, 3
      %p363 = por %p361, %p362
      %p365 = scmp.ne.s32.totalorder %s348, %s364
      %p366 = scmp.eq.s32.totalorder %s29, 0
      %p367 = por %p365, %p366
      %s368 = ssub.s32 %s30, %s42
      %s369 = ssub.s32 %s31, %s38
      %s370 = sor.u32 %s368, %s369
      %p371 = scmp.eq.s32.totalorder %s370, 0
      %s373 = sadd.s32 %s372, 1
      %s374 = scalar_select %p371, %s372, %s373
      %p377 = pneg %p371
      %p378 = scmp.eq.s32.totalorder %s23, 3
      %p379 = por %p377, %p378
      %p380 = scmp.ne.s32.totalorder %s372, %s375
      %p381 = scmp.eq.s32.totalorder %s23, 0
      %p382 = por %p380, %p381
      %p383 = scmp.ne.s32.totalorder %s372, %s375
      %p384 = scmp.eq.s32.totalorder %s28, 3
      %p385 = por %p383, %p384
      %p386 = scmp.ne.s32.totalorder %s375, %s376
      %p387 = scmp.eq.s32.totalorder %s28, 0
      %p388 = por %p386, %p387
      %p389 = scmp.ne.s32.totalorder %s375, %s376
      %p390 = scmp.eq.s32.totalorder %s29, 3
      %p391 = por %p389, %p390
      %p393 = scmp.ne.s32.totalorder %s376, %s392
      %p394 = scmp.eq.s32.totalorder %s29, 0
      %p395 = por %p393, %p394
      %s396 = ssub.s32 %s30, %s42
      %s397 = ssub.s32 %s31, %s38
      %s398 = sor.u32 %s396, %s397
      %p399 = scmp.eq.s32.totalorder %s398, 0
      %s401 = sadd.s32 %s400, 1
      %s402 = scalar_select %p399, %s400, %s401
      %p405 = pneg %p399
      %p406 = scmp.eq.s32.totalorder %s23, 3
      %p407 = por %p405, %p406
      %p408 = scmp.ne.s32.totalorder %s400, %s403
      %p409 = scmp.eq.s32.totalorder %s23, 0
      %p410 = por %p408, %p409
      %p411 = scmp.ne.s32.totalorder %s400, %s403
      %p412 = scmp.eq.s32.totalorder %s28, 3
      %p413 = por %p411, %p412
      %p414 = scmp.ne.s32.totalorder %s403, %s404
      %p415 = scmp.eq.s32.totalorder %s28, 0
      %p416 = por %p414, %p415
      %p417 = scmp.ne.s32.totalorder %s403, %s404
      %p418 = scmp.eq.s32.totalorder %s29, 3
      %p419 = por %p417, %p418
      %p421 = scmp.ne.s32.totalorder %s404, %s420
      %p422 = scmp.eq.s32.totalorder %s29, 0
      %p423 = por %p421, %p422
      %s424 = ssub.s32 %s30, %s42
      %s425 = ssub.s32 %s31, %s38
      %s426 = sor.u32 %s424, %s425
      %p427 = scmp.eq.s32.totalorder %s426, 0
      %s429 = sadd.s32 %s428, 1
      %s430 = scalar_select %p427, %s428, %s429
      %p433 = pneg %p427
      %p434 = scmp.eq.s32.totalorder %s23, 3
      %p435 = por %p433, %p434
      %p436 = scmp.ne.s32.totalorder %s428, %s431
      %p437 = scmp.eq.s32.totalorder %s23, 0
      %p438 = por %p436, %p437
      %p439 = scmp.ne.s32.totalorder %s428, %s431
      %p440 = scmp.eq.s32.totalorder %s28, 3
      %p441 = por %p439, %p440
      %p442 = scmp.ne.s32.totalorder %s431, %s432
      %p443 = scmp.eq.s32.totalorder %s28, 0
      %p444 = por %p442, %p443
      %p445 = scmp.ne.s32.totalorder %s431, %s432
      %p446 = scmp.eq.s32.totalorder %s29, 3
      %p447 = por %p445, %p446
      %p449 = scmp.ne.s32.totalorder %s432, %s448
      %p450 = scmp.eq.s32.totalorder %s29, 0
      %p451 = por %p449, %p450
      %s452 = ssub.s32 %s30, %s42
      %s453 = ssub.s32 %s31, %s38
      %s454 = sor.u32 %s452, %s453
      %p455 = scmp.eq.s32.totalorder %s454, 0
      %s457 = sadd.s32 %s456, 1
      %s458 = scalar_select %p455, %s456, %s457
      %p461 = pneg %p455
      %p462 = scmp.eq.s32.totalorder %s23, 3
      %p463 = por %p461, %p462
      %p464 = scmp.ne.s32.totalorder %s456, %s459
      %p465 = scmp.eq.s32.totalorder %s23, 0
      %p466 = por %p464, %p465
      %p467 = scmp.ne.s32.totalorder %s456, %s459
      %p468 = scmp.eq.s32.totalorder %s28, 3
      %p469 = por %p467, %p468
      %p470 = scmp.ne.s32.totalorder %s459, %s460
      %p471 = scmp.eq.s32.totalorder %s28, 0
      %p472 = por %p470, %p471
      %p473 = scmp.ne.s32.totalorder %s459, %s460
      %p474 = scmp.eq.s32.totalorder %s29, 3
      %p475 = por %p473, %p474
      %p477 = scmp.ne.s32.totalorder %s460, %s476
      %p478 = scmp.eq.s32.totalorder %s29, 0
      %p479 = por %p477, %p478
      %s480 = ssub.s32 %s30, %s42
      %s481 = ssub.s32 %s31, %s38
      %s482 = sor.u32 %s480, %s481
      %p483 = scmp.eq.s32.totalorder %s482, 0
      %s485 = sadd.s32 %s484, 1
      %s486 = scalar_select %p483, %s484, %s485
      %p489 = pneg %p483
      %p490 = scmp.eq.s32.totalorder %s23, 3
      %p491 = por %p489, %p490
      %p492 = scmp.ne.s32.totalorder %s484, %s487
      %p493 = scmp.eq.s32.totalorder %s23, 0
      %p494 = por %p492, %p493
      %p495 = scmp.ne.s32.totalorder %s484, %s487
      %p496 = scmp.eq.s32.totalorder %s28, 3
      %p497 = por %p495, %p496
      %p498 = scmp.ne.s32.totalorder %s487, %s488
      %p499 = scmp.eq.s32.totalorder %s28, 0
      %p500 = por %p498, %p499
      %p501 = scmp.ne.s32.totalorder %s487, %s488
      %p502 = scmp.eq.s32.totalorder %s29, 3
      %p503 = por %p501, %p502
      %p505 = scmp.ne.s32.totalorder %s488, %s504
      %p506 = scmp.eq.s32.totalorder %s29, 0
      %p507 = por %p505, %p506
      %s508 = ssub.s32 %s30, %s42
      %p509 = scmp.eq.s32.totalorder %s508, 0
      %s511 = sadd.s32 %s510, 1
      %s512 = scalar_select %p509, %s510, %s511
      %p515 = pneg %p509
      %p516 = scmp.eq.s32.totalorder %s23, 3
      %p517 = por %p515, %p516
      %p518 = scmp.ne.s32.totalorder %s510, %s513
      %p519 = scmp.eq.s32.totalorder %s23, 0
      %p520 = por %p518, %p519
      %p521 = scmp.ne.s32.totalorder %s510, %s513
      %p522 = scmp.eq.s32.totalorder %s28, 3
      %p523 = por %p521, %p522
      %p524 = scmp.ne.s32.totalorder %s513, %s514
      %p525 = scmp.eq.s32.totalorder %s28, 0
      %p526 = por %p524, %p525
      %p527 = scmp.ne.s32.totalorder %s513, %s514
      %p528 = scmp.eq.s32.totalorder %s29, 3
      %p529 = por %p527, %p528
      %p531 = scmp.ne.s32.totalorder %s514, %s530
      %p532 = scmp.eq.s32.totalorder %s29, 0
      %p533 = por %p531, %p532
      %p534 = scmp.le.s32.totalorder 1, %s23
      %p535 = scmp.lt.s32.totalorder %s23, 5
      %p536 = pnand %p534, %p535
      %p537 = pneg %p536
      // Predicated region
      $region9: #{loss_forward.1} parent=5 // pred_check
        _
      $region10: #{loss_forward.1} parent=5 // pred_check_branch
        %539 = sbr.rel (%p536) target = $region12
      $region11: #{loss_forward.1} parent=5 // pred_region
        %s540 = ssub.s32 %s23, 1
        // Predicated region
        $region13: #{loss_forward.1} parent=11 // pred_check
          %p541 = pneg %p56
        $region14: #{loss_forward.1} parent=11 // pred_check_branch
          %543 = sbr.rel (%p541) target = $region16
        $region15: #{loss_forward.1} parent=11 // pred_region
          _
        $region16: #{loss_forward.1} parent=11 // pred_fallthru
          _
      $region12: #{loss_forward.1} parent=5 // pred_fallthru
        _
      %p544 = scmp.lt.s32.totalorder %s23, 4
      // Predicated region
      $region17: #{loss_forward.1} parent=5 // pred_check
        %p545 = pneg %p544
      $region18: #{loss_forward.1} parent=5 // pred_check_branch
        %547 = sbr.rel (%p545) target = $region20
      $region19: #{loss_forward.1} parent=5 // pred_region
        // Predicated region
        $region21: #{loss_forward.1} parent=19 // pred_check
          %p548 = pneg %p78
        $region22: #{loss_forward.1} parent=19 // pred_check_branch
          %550 = sbr.rel (%p548) target = $region24
        $region23: #{loss_forward.1} parent=19 // pred_region
          %p551 = scmp.lt.s32.totalorder %s30, 1
          %s552 = scalar_select %p551, %s30, 1
          %p553 = scmp.lt.s32.totalorder %s31, 1
          %s554 = scalar_select %p553, %s31, 1
          %s555 = smul.addr %s552, 2
          %s556 = sadd.s32 %s554, %s555
          %s557 = smul.addr %s556, 8
          %s558 = scalar_lea.vmem %s1, %s557
        $region24: #{loss_forward.1} parent=19 // pred_fallthru
          _
        // Predicated region
        $region25: #{loss_forward.1} parent=19 // pred_check
          %p559 = pneg %p106
        $region26: #{loss_forward.1} parent=19 // pred_check_branch
          %561 = sbr.rel (%p559) target = $region28
        $region27: #{loss_forward.1} parent=19 // pred_region
          %p562 = scmp.lt.s32.totalorder %s30, 1
          %s563 = scalar_select %p562, %s30, 1
          %p564 = scmp.lt.s32.totalorder %s31, 1
          %s565 = scalar_select %p564, %s31, 1
          %s566 = smul.addr %s563, 2
          %s567 = sadd.s32 %s565, %s566
          %s568 = smul.addr %s567, 8
          %s569 = scalar_lea.vmem %s2, %s568
        $region28: #{loss_forward.1} parent=19 // pred_fallthru
          _
        // Predicated region
        $region29: #{loss_forward.1} parent=19 // pred_check
          %p570 = pneg %p134
        $region30: #{loss_forward.1} parent=19 // pred_check_branch
          %572 = sbr.rel (%p570) target = $region32
        $region31: #{loss_forward.1} parent=19 // pred_region
          %p573 = scmp.lt.s32.totalorder %s30, 1
          %s574 = scalar_select %p573, %s30, 1
          %p575 = scmp.lt.s32.totalorder %s31, 1
          %s576 = scalar_select %p575, %s31, 1
          %s577 = smul.addr %s574, 2
          %s578 = sadd.s32 %s576, %s577
          %s579 = smul.addr %s578, 8
          %s580 = scalar_lea.vmem %s3, %s579
        $region32: #{loss_forward.1} parent=19 // pred_fallthru
          _
        // Predicated region
        $region33: #{loss_forward.1} parent=19 // pred_check
          %p581 = pneg %p162
        $region34: #{loss_forward.1} parent=19 // pred_check_branch
          %583 = sbr.rel (%p581) target = $region36
        $region35: #{loss_forward.1} parent=19 // pred_region
          %p584 = scmp.lt.s32.totalorder %s30, 1
          %s585 = scalar_select %p584, %s30, 1
          %p586 = scmp.lt.s32.totalorder %s31, 1
          %s587 = scalar_select %p586, %s31, 1
          %s588 = smul.addr %s585, 2
          %s589 = sadd.s32 %s587, %s588
          %s590 = smul.addr %s589, 8
          %s591 = scalar_lea.vmem %s4, %s590
        $region36: #{loss_forward.1} parent=19 // pred_fallthru
          _
        // Predicated region
        $region37: #{loss_forward.1} parent=19 // pred_check
          %p592 = pneg %p190
        $region38: #{loss_forward.1} parent=19 // pred_check_branch
          %594 = sbr.rel (%p592) target = $region40
        $region39: #{loss_forward.1} parent=19 // pred_region
          %p595 = scmp.lt.s32.totalorder %s30, 1
          %s596 = scalar_select %p595, %s30, 1
          %p597 = scmp.lt.s32.totalorder %s31, 1
          %s598 = scalar_select %p597, %s31, 1
          %s599 = smul.addr %s596, 2
          %s600 = sadd.s32 %s598, %s599
          %s601 = smul.addr %s600, 8
          %s602 = scalar_lea.vmem %s5, %s601
        $region40: #{loss_forward.1} parent=19 // pred_fallthru
          _
        // Predicated region
        $region41: #{loss_forward.1} parent=19 // pred_check
          %p603 = pneg %p224
        $region42: #{loss_forward.1} parent=19 // pred_check_branch
          %605 = sbr.rel (%p603) target = $region44
        $region43: #{loss_forward.1} parent=19 // pred_region
          %s606 = ssub.s32 %s31, 1
          %p607 = scmp.gt.s32.totalorder %s606, 0
          %s608 = scalar_select %p607, %s606, 0
          %p609 = scmp.lt.s32.totalorder %s30, 1
          %s610 = scalar_select %p609, %s30, 1
          %p611 = scmp.lt.s32.totalorder %s608, 1
          %s612 = scalar_select %p611, %s608, 1
          %s613 = smul.addr %s610, 2
          %s614 = sadd.s32 %s612, %s613
          %s615 = smul.addr %s614, 8
          %s616 = scalar_lea.vmem %s6, %s615
          %s617 = ssub.s32 %s31, 1
          %p618 = scmp.gt.s32.totalorder %s617, 0
          %s619 = scalar_select %p618, %s617, 0
        $region44: #{loss_forward.1} parent=19 // pred_fallthru
          _
        // Predicated region
        $region45: #{loss_forward.1} parent=19 // pred_check
          %p620 = pneg %p258
        $region46: #{loss_forward.1} parent=19 // pred_check_branch
          %622 = sbr.rel (%p620) target = $region48
        $region47: #{loss_forward.1} parent=19 // pred_region
          %s623 = sadd.s32 %s31, 1
          %p624 = scmp.lt.s32.totalorder %s623, 1
          %s625 = scalar_select %p624, %s623, 1
          %p626 = scmp.lt.s32.totalorder %s30, 1
          %s627 = scalar_select %p626, %s30, 1
          %p628 = scmp.lt.s32.totalorder %s625, 1
          %s629 = scalar_select %p628, %s625, 1
          %s630 = smul.addr %s627, 2
          %s631 = sadd.s32 %s629, %s630
          %s632 = smul.addr %s631, 8
          %s633 = scalar_lea.vmem %s7, %s632
          %s634 = sadd.s32 %s31, 1
          %p635 = scmp.lt.s32.totalorder %s634, 1
          %s636 = scalar_select %p635, %s634, 1
        $region48: #{loss_forward.1} parent=19 // pred_fallthru
          _
        // Predicated region
        $region49: #{loss_forward.1} parent=19 // pred_check
          %p637 = pneg %p286
        $region50: #{loss_forward.1} parent=19 // pred_check_branch
          %639 = sbr.rel (%p637) target = $region52
        $region51: #{loss_forward.1} parent=19 // pred_region
          %s640 = sand.u32 %s276, 1
          %s641 = sand.u32 %s276, 1
          %s642 = smul.addr %s641, 16
          %s643 = scalar_lea.vmem [#allocation3], %s642
          %s644 = smul.addr %s30, 4
          %s645 = sadd.s32 %s31, %s644
          %s646 = smul.addr %s645, 8
          %s647 = scalar_lea.vmem %s8, %s646
          // Predicated region
          $region53: #{loss_forward.1} parent=51 // pred_check
            _
          $region54: #{loss_forward.1} parent=51 // pred_check_branch
            %649 = sbr.rel (0) target = $region56
          $region55: #{loss_forward.1} parent=51 // pred_region
            // Predicated region
            $region57: #{loss_forward.1} parent=55 // pred_check
              _
            $region58: #{loss_forward.1} parent=55 // pred_check_branch
              %651 = sbr.rel (0) target = $region60
            $region59: #{loss_forward.1} parent=55 // pred_region
              // Predicated region
              $region72: #{loss_forward.1} parent=59 // pred_check
                _
              $region73: #{loss_forward.1} parent=59 // pred_check_branch
                %669 = sbr.rel (0) target = $region75
              $region74: #{loss_forward.1} parent=59 // pred_region
                loop: start=0, step=1, limit=1
                $region76: #{loss_forward.1} parent=74 // loop_pre_header
                  _
                $region77: #{loss_forward.1} parent=74 // loop_header
                  %s671 = sphi 0, %s675
                  %p672 = scmp.ge.s32.totalorder %s671, 1
                  %s676 = sphi %s647, %s647
                  %s677 = sphi %s643, %s643
                $region78: #{loss_forward.1} parent=74 // loop_header_branch
                  %674 = sbr.rel (%p672) target = $region82
                $region79: #{loss_forward.1} parent=74 // loop_body
                  %v678 = vld [vmem:[%s676] sm:$0xff]
                  %679 = vst [vmem:[%s677] sm:$0xff] %v678
                  %v680 = vld [vmem:[%s676 + $0x10] sm:$0xff]
                  %681 = vst [vmem:[%s677 + $0x8] sm:$0xff] %v680
                $region80: #{loss_forward.1} parent=74 // loop_footer
                  %s675 = sadd.s32 1, %s671
                $region81: #{loss_forward.1} parent=74 // loop_footer_branch
                  %670 = sbr.rel target = $region77
                $region82: #{loss_forward.1} parent=74 // loop_exit
                  _
              $region75: #{loss_forward.1} parent=59 // pred_fallthru
                _
              // Predicated region
              $region83: #{loss_forward.1} parent=59 // pred_check
                _
              $region84: #{loss_forward.1} parent=59 // pred_check_branch
                %683 = sbr.rel target = $region86
              $region85: #{loss_forward.1} parent=59 // pred_region
                _
              $region86: #{loss_forward.1} parent=59 // pred_fallthru
                _
            $region60: #{loss_forward.1} parent=55 // pred_fallthru
              _
            // Predicated region
            $region61: #{loss_forward.1} parent=55 // pred_check
              _
            $region62: #{loss_forward.1} parent=55 // pred_check_branch
              %653 = sbr.rel target = $region64
            $region63: #{loss_forward.1} parent=55 // pred_region
              %s655 = ssub.s32 256, 1
              loop: start=0, step=1, limit=1
              $region65: #{loss_forward.1} parent=63 // loop_pre_header
                _
              $region66: #{loss_forward.1} parent=63 // loop_header
                %s657 = sphi 0, %s661
                %p658 = scmp.ge.s32.totalorder %s657, 1
                %s662 = sphi %s647, %s647
                %s663 = sphi %s643, %s643
              $region67: #{loss_forward.1} parent=63 // loop_header_branch
                %660 = sbr.rel (%p658) target = $region71
              $region68: #{loss_forward.1} parent=63 // loop_body
                %v664 = vld [vmem:[%s662] sm:%s655]
                %665 = vst [vmem:[%s663] sm:%s655] %v664
                %v666 = vld [vmem:[%s662 + $0x10] sm:%s655]
                %667 = vst [vmem:[%s663 + $0x8] sm:%s655] %v666
              $region69: #{loss_forward.1} parent=63 // loop_footer
                %s661 = sadd.s32 1, %s657
              $region70: #{loss_forward.1} parent=63 // loop_footer_branch
                %656 = sbr.rel target = $region66
              $region71: #{loss_forward.1} parent=63 // loop_exit
                _
            $region64: #{loss_forward.1} parent=55 // pred_fallthru
              _
          $region56: #{loss_forward.1} parent=51 // pred_fallthru
            _
          %684 = vnop
        $region52: #{loss_forward.1} parent=19 // pred_fallthru
          _
        // Predicated region
        $region87: #{loss_forward.1} parent=19 // pred_check
          %p685 = pneg %p320
        $region88: #{loss_forward.1} parent=19 // pred_check_branch
          %687 = sbr.rel (%p685) target = $region90
        $region89: #{loss_forward.1} parent=19 // pred_region
          %s688 = sand.u32 %s310, 1
          %s689 = sand.u32 %s310, 1
          %s690 = smul.addr %s689, 16
          %s691 = scalar_lea.vmem [#allocation4], %s690
          %s692 = ssub.s32 %s31, 1
          %p693 = scmp.gt.s32.totalorder %s692, 0
          %s694 = scalar_select %p693, %s692, 0
          %s695 = smul.addr %s30, 4
          %s696 = sadd.s32 %s694, %s695
          %s697 = smul.addr %s696, 8
          %s698 = scalar_lea.vmem %s9, %s697
          // Predicated region
          $region91: #{loss_forward.1} parent=89 // pred_check
            _
          $region92: #{loss_forward.1} parent=89 // pred_check_branch
            %700 = sbr.rel (0) target = $region94
          $region93: #{loss_forward.1} parent=89 // pred_region
            // Predicated region
            $region95: #{loss_forward.1} parent=93 // pred_check
              _
            $region96: #{loss_forward.1} parent=93 // pred_check_branch
              %702 = sbr.rel (0) target = $region98
            $region97: #{loss_forward.1} parent=93 // pred_region
              // Predicated region
              $region110: #{loss_forward.1} parent=97 // pred_check
                _
              $region111: #{loss_forward.1} parent=97 // pred_check_branch
                %720 = sbr.rel (0) target = $region113
              $region112: #{loss_forward.1} parent=97 // pred_region
                loop: start=0, step=1, limit=1
                $region114: #{loss_forward.1} parent=112 // loop_pre_header
                  _
                $region115: #{loss_forward.1} parent=112 // loop_header
                  %s722 = sphi 0, %s726
                  %p723 = scmp.ge.s32.totalorder %s722, 1
                  %s727 = sphi %s698, %s698
                  %s728 = sphi %s691, %s691
                $region116: #{loss_forward.1} parent=112 // loop_header_branch
                  %725 = sbr.rel (%p723) target = $region120
                $region117: #{loss_forward.1} parent=112 // loop_body
                  %v729 = vld [vmem:[%s727] sm:$0xff]
                  %730 = vst [vmem:[%s728] sm:$0xff] %v729
                  %v731 = vld [vmem:[%s727 + $0x10] sm:$0xff]
                  %732 = vst [vmem:[%s728 + $0x8] sm:$0xff] %v731
                $region118: #{loss_forward.1} parent=112 // loop_footer
                  %s726 = sadd.s32 1, %s722
                $region119: #{loss_forward.1} parent=112 // loop_footer_branch
                  %721 = sbr.rel target = $region115
                $region120: #{loss_forward.1} parent=112 // loop_exit
                  _
              $region113: #{loss_forward.1} parent=97 // pred_fallthru
                _
              // Predicated region
              $region121: #{loss_forward.1} parent=97 // pred_check
                _
              $region122: #{loss_forward.1} parent=97 // pred_check_branch
                %734 = sbr.rel target = $region124
              $region123: #{loss_forward.1} parent=97 // pred_region
                _
              $region124: #{loss_forward.1} parent=97 // pred_fallthru
                _
            $region98: #{loss_forward.1} parent=93 // pred_fallthru
              _
            // Predicated region
            $region99: #{loss_forward.1} parent=93 // pred_check
              _
            $region100: #{loss_forward.1} parent=93 // pred_check_branch
              %704 = sbr.rel target = $region102
            $region101: #{loss_forward.1} parent=93 // pred_region
              %s706 = ssub.s32 256, 1
              loop: start=0, step=1, limit=1
              $region103: #{loss_forward.1} parent=101 // loop_pre_header
                _
              $region104: #{loss_forward.1} parent=101 // loop_header
                %s708 = sphi 0, %s712
                %p709 = scmp.ge.s32.totalorder %s708, 1
                %s713 = sphi %s698, %s698
                %s714 = sphi %s691, %s691
              $region105: #{loss_forward.1} parent=101 // loop_header_branch
                %711 = sbr.rel (%p709) target = $region109
              $region106: #{loss_forward.1} parent=101 // loop_body
                %v715 = vld [vmem:[%s713] sm:%s706]
                %716 = vst [vmem:[%s714] sm:%s706] %v715
                %v717 = vld [vmem:[%s713 + $0x10] sm:%s706]
                %718 = vst [vmem:[%s714 + $0x8] sm:%s706] %v717
              $region107: #{loss_forward.1} parent=101 // loop_footer
                %s712 = sadd.s32 1, %s708
              $region108: #{loss_forward.1} parent=101 // loop_footer_branch
                %707 = sbr.rel target = $region104
              $region109: #{loss_forward.1} parent=101 // loop_exit
                _
            $region102: #{loss_forward.1} parent=93 // pred_fallthru
              _
          $region94: #{loss_forward.1} parent=89 // pred_fallthru
            _
          %735 = vnop
        $region90: #{loss_forward.1} parent=19 // pred_fallthru
          _
        // Predicated region
        $region125: #{loss_forward.1} parent=19 // pred_check
          %p736 = pneg %p354
        $region126: #{loss_forward.1} parent=19 // pred_check_branch
          %738 = sbr.rel (%p736) target = $region128
        $region127: #{loss_forward.1} parent=19 // pred_region
          %s739 = sand.u32 %s344, 1
          %s740 = sand.u32 %s344, 1
          %s741 = smul.addr %s740, 16
          %s742 = scalar_lea.vmem [#allocation5], %s741
          %s743 = sadd.s32 %s31, 1
          %p744 = scmp.lt.s32.totalorder %s743, 1
          %s745 = scalar_select %p744, %s743, 1
          %s746 = smul.addr %s30, 4
          %s747 = sadd.s32 %s745, %s746
          %s748 = smul.addr %s747, 8
          %s749 = scalar_lea.vmem %s10, %s748
          // Predicated region
          $region129: #{loss_forward.1} parent=127 // pred_check
            _
          $region130: #{loss_forward.1} parent=127 // pred_check_branch
            %751 = sbr.rel (0) target = $region132
          $region131: #{loss_forward.1} parent=127 // pred_region
            // Predicated region
            $region133: #{loss_forward.1} parent=131 // pred_check
              _
            $region134: #{loss_forward.1} parent=131 // pred_check_branch
              %753 = sbr.rel (0) target = $region136
            $region135: #{loss_forward.1} parent=131 // pred_region
              // Predicated region
              $region148: #{loss_forward.1} parent=135 // pred_check
                _
              $region149: #{loss_forward.1} parent=135 // pred_check_branch
                %771 = sbr.rel (0) target = $region151
              $region150: #{loss_forward.1} parent=135 // pred_region
                loop: start=0, step=1, limit=1
                $region152: #{loss_forward.1} parent=150 // loop_pre_header
                  _
                $region153: #{loss_forward.1} parent=150 // loop_header
                  %s773 = sphi 0, %s777
                  %p774 = scmp.ge.s32.totalorder %s773, 1
                  %s778 = sphi %s749, %s749
                  %s779 = sphi %s742, %s742
                $region154: #{loss_forward.1} parent=150 // loop_header_branch
                  %776 = sbr.rel (%p774) target = $region158
                $region155: #{loss_forward.1} parent=150 // loop_body
                  %v780 = vld [vmem:[%s778] sm:$0xff]
                  %781 = vst [vmem:[%s779] sm:$0xff] %v780
                  %v782 = vld [vmem:[%s778 + $0x10] sm:$0xff]
                  %783 = vst [vmem:[%s779 + $0x8] sm:$0xff] %v782
                $region156: #{loss_forward.1} parent=150 // loop_footer
                  %s777 = sadd.s32 1, %s773
                $region157: #{loss_forward.1} parent=150 // loop_footer_branch
                  %772 = sbr.rel target = $region153
                $region158: #{loss_forward.1} parent=150 // loop_exit
                  _
              $region151: #{loss_forward.1} parent=135 // pred_fallthru
                _
              // Predicated region
              $region159: #{loss_forward.1} parent=135 // pred_check
                _
              $region160: #{loss_forward.1} parent=135 // pred_check_branch
                %785 = sbr.rel target = $region162
              $region161: #{loss_forward.1} parent=135 // pred_region
                _
              $region162: #{loss_forward.1} parent=135 // pred_fallthru
                _
            $region136: #{loss_forward.1} parent=131 // pred_fallthru
              _
            // Predicated region
            $region137: #{loss_forward.1} parent=131 // pred_check
              _
            $region138: #{loss_forward.1} parent=131 // pred_check_branch
              %755 = sbr.rel target = $region140
            $region139: #{loss_forward.1} parent=131 // pred_region
              %s757 = ssub.s32 256, 1
              loop: start=0, step=1, limit=1
              $region141: #{loss_forward.1} parent=139 // loop_pre_header
                _
              $region142: #{loss_forward.1} parent=139 // loop_header
                %s759 = sphi 0, %s763
                %p760 = scmp.ge.s32.totalorder %s759, 1
                %s764 = sphi %s749, %s749
                %s765 = sphi %s742, %s742
              $region143: #{loss_forward.1} parent=139 // loop_header_branch
                %762 = sbr.rel (%p760) target = $region147
              $region144: #{loss_forward.1} parent=139 // loop_body
                %v766 = vld [vmem:[%s764] sm:%s757]
                %767 = vst [vmem:[%s765] sm:%s757] %v766
                %v768 = vld [vmem:[%s764 + $0x10] sm:%s757]
                %769 = vst [vmem:[%s765 + $0x8] sm:%s757] %v768
              $region145: #{loss_forward.1} parent=139 // loop_footer
                %s763 = sadd.s32 1, %s759
              $region146: #{loss_forward.1} parent=139 // loop_footer_branch
                %758 = sbr.rel target = $region142
              $region147: #{loss_forward.1} parent=139 // loop_exit
                _
            $region140: #{loss_forward.1} parent=131 // pred_fallthru
              _
          $region132: #{loss_forward.1} parent=127 // pred_fallthru
            _
          %786 = vnop
        $region128: #{loss_forward.1} parent=19 // pred_fallthru
          _
        // Predicated region
        $region163: #{loss_forward.1} parent=19 // pred_check
          %p787 = pneg %p382
        $region164: #{loss_forward.1} parent=19 // pred_check_branch
          %789 = sbr.rel (%p787) target = $region166
        $region165: #{loss_forward.1} parent=19 // pred_region
          %p790 = scmp.lt.s32.totalorder %s30, 1
          %s791 = scalar_select %p790, %s30, 1
          %p792 = scmp.lt.s32.totalorder %s31, 1
          %s793 = scalar_select %p792, %s31, 1
          %s794 = smul.addr %s791, 2
          %s795 = sadd.s32 %s793, %s794
          %s796 = smul.addr %s795, 8
          %s797 = scalar_lea.vmem %s11, %s796
        $region166: #{loss_forward.1} parent=19 // pred_fallthru
          _
        // Predicated region
        $region167: #{loss_forward.1} parent=19 // pred_check
          %p798 = pneg %p410
        $region168: #{loss_forward.1} parent=19 // pred_check_branch
          %800 = sbr.rel (%p798) target = $region170
        $region169: #{loss_forward.1} parent=19 // pred_region
          %p801 = scmp.lt.s32.totalorder %s30, 1
          %s802 = scalar_select %p801, %s30, 1
          %p803 = scmp.lt.s32.totalorder %s31, 1
          %s804 = scalar_select %p803, %s31, 1
          %s805 = smul.addr %s802, 2
          %s806 = sadd.s32 %s804, %s805
          %s807 = smul.addr %s806, 8
          %s808 = scalar_lea.vmem %s12, %s807
        $region170: #{loss_forward.1} parent=19 // pred_fallthru
          _
        // Predicated region
        $region171: #{loss_forward.1} parent=19 // pred_check
          %p809 = pneg %p438
        $region172: #{loss_forward.1} parent=19 // pred_check_branch
          %811 = sbr.rel (%p809) target = $region174
        $region173: #{loss_forward.1} parent=19 // pred_region
          %p812 = scmp.lt.s32.totalorder %s30, 1
          %s813 = scalar_select %p812, %s30, 1
          %p814 = scmp.lt.s32.totalorder %s31, 1
          %s815 = scalar_select %p814, %s31, 1
          %s816 = smul.addr %s813, 2
          %s817 = sadd.s32 %s815, %s816
          %s818 = smul.addr %s817, 8
          %s819 = scalar_lea.vmem %s13, %s818
        $region174: #{loss_forward.1} parent=19 // pred_fallthru
          _
        // Predicated region
        $region175: #{loss_forward.1} parent=19 // pred_check
          %p820 = pneg %p466
        $region176: #{loss_forward.1} parent=19 // pred_check_branch
          %822 = sbr.rel (%p820) target = $region178
        $region177: #{loss_forward.1} parent=19 // pred_region
          %p823 = scmp.lt.s32.totalorder %s30, 1
          %s824 = scalar_select %p823, %s30, 1
          %p825 = scmp.lt.s32.totalorder %s31, 1
          %s826 = scalar_select %p825, %s31, 1
          %s827 = smul.addr %s824, 2
          %s828 = sadd.s32 %s826, %s827
          %s829 = smul.addr %s828, 8
          %s830 = scalar_lea.vmem %s14, %s829
        $region178: #{loss_forward.1} parent=19 // pred_fallthru
          _
        // Predicated region
        $region179: #{loss_forward.1} parent=19 // pred_check
          %p831 = pneg %p494
        $region180: #{loss_forward.1} parent=19 // pred_check_branch
          %833 = sbr.rel (%p831) target = $region182
        $region181: #{loss_forward.1} parent=19 // pred_region
          %p834 = scmp.lt.s32.totalorder %s30, 1
          %s835 = scalar_select %p834, %s30, 1
          %p836 = scmp.lt.s32.totalorder %s31, 1
          %s837 = scalar_select %p836, %s31, 1
          %s838 = smul.addr %s835, 2
          %s839 = sadd.s32 %s837, %s838
          %s840 = smul.addr %s839, 8
          %s841 = scalar_lea.vmem %s15, %s840
        $region182: #{loss_forward.1} parent=19 // pred_fallthru
          _
      $region20: #{loss_forward.1} parent=5 // pred_fallthru
        _
      %p842 = scmp.le.s32.totalorder 1, %s23
      %p843 = scmp.lt.s32.totalorder %s23, 5
      %p844 = pnand %p842, %p843
      %p845 = pneg %p844
      // Predicated region
      $region183: #{loss_forward.1} parent=5 // pred_check
        _
      $region184: #{loss_forward.1} parent=5 // pred_check_branch
        %847 = sbr.rel (%p844) target = $region186
      $region185: #{loss_forward.1} parent=5 // pred_region
        %s848 = ssub.s32 %s23, 1
        %s849 = sand.u32 %s279, 1
        %s850 = sand.u32 %s279, 1
        %s851 = smul.addr %s850, 16
        %s852 = scalar_lea.vmem [#allocation3], %s851
        // Predicated region
        $region187: #{loss_forward.1} parent=185 // pred_check
          %p853 = pneg %p292
        $region188: #{loss_forward.1} parent=185 // pred_check_branch
          %855 = sbr.rel (%p853) target = $region190
        $region189: #{loss_forward.1} parent=185 // pred_region
          _
        $region190: #{loss_forward.1} parent=185 // pred_fallthru
          _
        %s856 = sand.u32 %s313, 1
        %s857 = sand.u32 %s313, 1
        %s858 = smul.addr %s857, 16
        %s859 = scalar_lea.vmem [#allocation4], %s858
        // Predicated region
        $region191: #{loss_forward.1} parent=185 // pred_check
          %p860 = pneg %p326
        $region192: #{loss_forward.1} parent=185 // pred_check_branch
          %862 = sbr.rel (%p860) target = $region194
        $region193: #{loss_forward.1} parent=185 // pred_region
          _
        $region194: #{loss_forward.1} parent=185 // pred_fallthru
          _
        %s863 = sand.u32 %s347, 1
        %s864 = sand.u32 %s347, 1
        %s865 = smul.addr %s864, 16
        %s866 = scalar_lea.vmem [#allocation5], %s865
        // Predicated region
        $region195: #{loss_forward.1} parent=185 // pred_check
          %p867 = pneg %p360
        $region196: #{loss_forward.1} parent=185 // pred_check_branch
          %869 = sbr.rel (%p867) target = $region198
        $region197: #{loss_forward.1} parent=185 // pred_region
          _
        $region198: #{loss_forward.1} parent=185 // pred_fallthru
          _
        %p870 = pneg %p56
        %p871 = pneg %p53
        %p872 = scmp.lt.s32.totalorder %s32, 1
        %s873 = scalar_select %p872, %s32, 1
        %p874 = scmp.lt.s32.totalorder %s33, 1
        %s875 = scalar_select %p874, %s33, 1
        %s876 = smul.addr %s873, 2
        %s877 = sadd.s32 %s875, %s876
        %s878 = smul.addr %s877, 8
        %s879 = scalar_lea.vmem %s1, %s878
        %p880 = pneg %p84
        %p881 = pneg %p81
        %p882 = scmp.lt.s32.totalorder %s32, 1
        %s883 = scalar_select %p882, %s32, 1
        %p884 = scmp.lt.s32.totalorder %s33, 1
        %s885 = scalar_select %p884, %s33, 1
        %s886 = smul.addr %s883, 2
        %s887 = sadd.s32 %s885, %s886
        %s888 = smul.addr %s887, 8
        %s889 = scalar_lea.vmem %s2, %s888
        %p890 = pneg %p112
        %p891 = pneg %p109
        %p892 = scmp.lt.s32.totalorder %s32, 1
        %s893 = scalar_select %p892, %s32, 1
        %p894 = scmp.lt.s32.totalorder %s33, 1
        %s895 = scalar_select %p894, %s33, 1
        %s896 = smul.addr %s893, 2
        %s897 = sadd.s32 %s895, %s896
        %s898 = smul.addr %s897, 8
        %s899 = scalar_lea.vmem %s3, %s898
        %p900 = pneg %p140
        %p901 = pneg %p137
        %p902 = scmp.lt.s32.totalorder %s32, 1
        %s903 = scalar_select %p902, %s32, 1
        %p904 = scmp.lt.s32.totalorder %s33, 1
        %s905 = scalar_select %p904, %s33, 1
        %s906 = smul.addr %s903, 2
        %s907 = sadd.s32 %s905, %s906
        %s908 = smul.addr %s907, 8
        %s909 = scalar_lea.vmem %s4, %s908
        %p910 = pneg %p168
        %p911 = pneg %p165
        %p912 = scmp.lt.s32.totalorder %s32, 1
        %s913 = scalar_select %p912, %s32, 1
        %p914 = scmp.lt.s32.totalorder %s33, 1
        %s915 = scalar_select %p914, %s33, 1
        %s916 = smul.addr %s913, 2
        %s917 = sadd.s32 %s915, %s916
        %s918 = smul.addr %s917, 8
        %s919 = scalar_lea.vmem %s5, %s918
        %p920 = pneg %p196
        %p921 = pneg %p193
        %s922 = ssub.s32 %s33, 1
        %p923 = scmp.gt.s32.totalorder %s922, 0
        %s924 = scalar_select %p923, %s922, 0
        %p925 = scmp.lt.s32.totalorder %s32, 1
        %s926 = scalar_select %p925, %s32, 1
        %p927 = scmp.lt.s32.totalorder %s924, 1
        %s928 = scalar_select %p927, %s924, 1
        %s929 = smul.addr %s926, 2
        %s930 = sadd.s32 %s928, %s929
        %s931 = smul.addr %s930, 8
        %s932 = scalar_lea.vmem %s6, %s931
        %p933 = pneg %p230
        %p934 = pneg %p227
        %s935 = sadd.s32 %s33, 1
        %p936 = scmp.lt.s32.totalorder %s935, 1
        %s937 = scalar_select %p936, %s935, 1
        %p938 = scmp.lt.s32.totalorder %s32, 1
        %s939 = scalar_select %p938, %s32, 1
        %p940 = scmp.lt.s32.totalorder %s937, 1
        %s941 = scalar_select %p940, %s937, 1
        %s942 = smul.addr %s939, 2
        %s943 = sadd.s32 %s941, %s942
        %s944 = smul.addr %s943, 8
        %s945 = scalar_lea.vmem %s7, %s944
        %p946 = pneg %p264
        %p947 = pneg %p261
        %s948 = sand.u32 %s279, 1
        %s949 = sand.u32 %s279, 1
        %s950 = smul.addr %s949, 16
        %s951 = scalar_lea.vmem [#allocation3], %s950
        %p952 = pneg %p292
        %p953 = pneg %p289
        %s954 = sand.u32 %s313, 1
        %s955 = sand.u32 %s313, 1
        %s956 = smul.addr %s955, 16
        %s957 = scalar_lea.vmem [#allocation4], %s956
        %p958 = pneg %p326
        %p959 = pneg %p323
        %s960 = sand.u32 %s347, 1
        %s961 = sand.u32 %s347, 1
        %s962 = smul.addr %s961, 16
        %s963 = scalar_lea.vmem [#allocation5], %s962
        %p964 = pneg %p360
        %p965 = pneg %p357
        %p966 = scmp.lt.s32.totalorder %s32, 1
        %s967 = scalar_select %p966, %s32, 1
        %p968 = scmp.lt.s32.totalorder %s33, 1
        %s969 = scalar_select %p968, %s33, 1
        %s970 = smul.addr %s967, 2
        %s971 = sadd.s32 %s969, %s970
        %s972 = smul.addr %s971, 8
        %s973 = scalar_lea.vmem %s11, %s972
        %p974 = pneg %p388
        %p975 = pneg %p385
        %p976 = scmp.lt.s32.totalorder %s32, 1
        %s977 = scalar_select %p976, %s32, 1
        %p978 = scmp.lt.s32.totalorder %s33, 1
        %s979 = scalar_select %p978, %s33, 1
        %s980 = smul.addr %s977, 2
        %s981 = sadd.s32 %s979, %s980
        %s982 = smul.addr %s981, 8
        %s983 = scalar_lea.vmem %s12, %s982
        %p984 = pneg %p416
        %p985 = pneg %p413
        %p986 = scmp.lt.s32.totalorder %s32, 1
        %s987 = scalar_select %p986, %s32, 1
        %p988 = scmp.lt.s32.totalorder %s33, 1
        %s989 = scalar_select %p988, %s33, 1
        %s990 = smul.addr %s987, 2
        %s991 = sadd.s32 %s989, %s990
        %s992 = smul.addr %s991, 8
        %s993 = scalar_lea.vmem %s13, %s992
        %p994 = pneg %p444
        %p995 = pneg %p441
        %p996 = scmp.lt.s32.totalorder %s32, 1
        %s997 = scalar_select %p996, %s32, 1
        %p998 = scmp.lt.s32.totalorder %s33, 1
        %s999 = scalar_select %p998, %s33, 1
        %s1000 = smul.addr %s997, 2
        %s1001 = sadd.s32 %s999, %s1000
        %s1002 = smul.addr %s1001, 8
        %s1003 = scalar_lea.vmem %s14, %s1002
        %p1004 = pneg %p472
        %p1005 = pneg %p469
        %p1006 = scmp.lt.s32.totalorder %s32, 1
        %s1007 = scalar_select %p1006, %s32, 1
        %p1008 = scmp.lt.s32.totalorder %s33, 1
        %s1009 = scalar_select %p1008, %s33, 1
        %s1010 = smul.addr %s1007, 2
        %s1011 = sadd.s32 %s1009, %s1010
        %s1012 = smul.addr %s1011, 8
        %s1013 = scalar_lea.vmem %s15, %s1012
        %p1014 = pneg %p500
        %p1015 = pneg %p497
        %p1016 = pneg %p526
        %p1017 = pneg %p523
        %p1018 = scmp.lt.s32.totalorder %s32, 1
        %s1019 = scalar_select %p1018, %s32, 1
        %s1020 = smul.addr %s1019, 8
        %s1021 = scalar_lea.vmem %s16, %s1020
        %p1022 = scmp.lt.s32.totalorder %s32, 1
        %s1023 = scalar_select %p1022, %s32, 1
        %p1024 = scmp.lt.s32.totalorder %s33, 1
        %s1025 = scalar_select %p1024, %s33, 1
        %s1026 = smul.addr %s1023, 2
        %s1027 = sadd.s32 %s1025, %s1026
        %s1028 = smul.addr %s1027, 8
        %s1029 = scalar_lea.vmem %s1, %s1028
        %p1030 = scmp.lt.s32.totalorder %s32, 1
        %s1031 = scalar_select %p1030, %s32, 1
        %p1032 = scmp.lt.s32.totalorder %s33, 1
        %s1033 = scalar_select %p1032, %s33, 1
        %s1034 = smul.addr %s1031, 2
        %s1035 = sadd.s32 %s1033, %s1034
        %s1036 = smul.addr %s1035, 8
        %s1037 = scalar_lea.vmem %s2, %s1036
        %p1038 = scmp.lt.s32.totalorder %s32, 1
        %s1039 = scalar_select %p1038, %s32, 1
        %p1040 = scmp.lt.s32.totalorder %s33, 1
        %s1041 = scalar_select %p1040, %s33, 1
        %s1042 = smul.addr %s1039, 2
        %s1043 = sadd.s32 %s1041, %s1042
        %s1044 = smul.addr %s1043, 8
        %s1045 = scalar_lea.vmem %s3, %s1044
        %p1046 = scmp.lt.s32.totalorder %s32, 1
        %s1047 = scalar_select %p1046, %s32, 1
        %p1048 = scmp.lt.s32.totalorder %s33, 1
        %s1049 = scalar_select %p1048, %s33, 1
        %s1050 = smul.addr %s1047, 2
        %s1051 = sadd.s32 %s1049, %s1050
        %s1052 = smul.addr %s1051, 8
        %s1053 = scalar_lea.vmem %s4, %s1052
        %p1054 = scmp.lt.s32.totalorder %s32, 1
        %s1055 = scalar_select %p1054, %s32, 1
        %p1056 = scmp.lt.s32.totalorder %s33, 1
        %s1057 = scalar_select %p1056, %s33, 1
        %s1058 = smul.addr %s1055, 2
        %s1059 = sadd.s32 %s1057, %s1058
        %s1060 = smul.addr %s1059, 8
        %s1061 = scalar_lea.vmem %s5, %s1060
        %s1062 = ssub.s32 %s33, 1
        %p1063 = scmp.gt.s32.totalorder %s1062, 0
        %s1064 = scalar_select %p1063, %s1062, 0
        %p1065 = scmp.lt.s32.totalorder %s32, 1
        %s1066 = scalar_select %p1065, %s32, 1
        %p1067 = scmp.lt.s32.totalorder %s1064, 1
        %s1068 = scalar_select %p1067, %s1064, 1
        %s1069 = smul.addr %s1066, 2
        %s1070 = sadd.s32 %s1068, %s1069
        %s1071 = smul.addr %s1070, 8
        %s1072 = scalar_lea.vmem %s6, %s1071
        %s1073 = ssub.s32 %s33, 1
        %p1074 = scmp.gt.s32.totalorder %s1073, 0
        %s1075 = scalar_select %p1074, %s1073, 0
        %s1076 = sadd.s32 %s33, 1
        %p1077 = scmp.lt.s32.totalorder %s1076, 1
        %s1078 = scalar_select %p1077, %s1076, 1
        %p1079 = scmp.lt.s32.totalorder %s32, 1
        %s1080 = scalar_select %p1079, %s32, 1
        %p1081 = scmp.lt.s32.totalorder %s1078, 1
        %s1082 = scalar_select %p1081, %s1078, 1
        %s1083 = smul.addr %s1080, 2
        %s1084 = sadd.s32 %s1082, %s1083
        %s1085 = smul.addr %s1084, 8
        %s1086 = scalar_lea.vmem %s7, %s1085
        %s1087 = sadd.s32 %s33, 1
        %p1088 = scmp.lt.s32.totalorder %s1087, 1
        %s1089 = scalar_select %p1088, %s1087, 1
        %s1090 = ssub.s32 %s33, 1
        %p1091 = scmp.gt.s32.totalorder %s1090, 0
        %s1092 = scalar_select %p1091, %s1090, 0
        %s1093 = sadd.s32 %s33, 1
        %p1094 = scmp.lt.s32.totalorder %s1093, 1
        %s1095 = scalar_select %p1094, %s1093, 1
        %p1096 = scmp.lt.s32.totalorder %s32, 1
        %s1097 = scalar_select %p1096, %s32, 1
        %p1098 = scmp.lt.s32.totalorder %s33, 1
        %s1099 = scalar_select %p1098, %s33, 1
        %s1100 = smul.addr %s1097, 2
        %s1101 = sadd.s32 %s1099, %s1100
        %s1102 = smul.addr %s1101, 8
        %s1103 = scalar_lea.vmem %s11, %s1102
        %p1104 = scmp.lt.s32.totalorder %s32, 1
        %s1105 = scalar_select %p1104, %s32, 1
        %p1106 = scmp.lt.s32.totalorder %s33, 1
        %s1107 = scalar_select %p1106, %s33, 1
        %s1108 = smul.addr %s1105, 2
        %s1109 = sadd.s32 %s1107, %s1108
        %s1110 = smul.addr %s1109, 8
        %s1111 = scalar_lea.vmem %s12, %s1110
        %p1112 = scmp.lt.s32.totalorder %s32, 1
        %s1113 = scalar_select %p1112, %s32, 1
        %p1114 = scmp.lt.s32.totalorder %s33, 1
        %s1115 = scalar_select %p1114, %s33, 1
        %s1116 = smul.addr %s1113, 2
        %s1117 = sadd.s32 %s1115, %s1116
        %s1118 = smul.addr %s1117, 8
        %s1119 = scalar_lea.vmem %s13, %s1118
        %p1120 = scmp.lt.s32.totalorder %s32, 1
        %s1121 = scalar_select %p1120, %s32, 1
        %p1122 = scmp.lt.s32.totalorder %s33, 1
        %s1123 = scalar_select %p1122, %s33, 1
        %s1124 = smul.addr %s1121, 2
        %s1125 = sadd.s32 %s1123, %s1124
        %s1126 = smul.addr %s1125, 8
        %s1127 = scalar_lea.vmem %s14, %s1126
        %p1128 = scmp.lt.s32.totalorder %s32, 1
        %s1129 = scalar_select %p1128, %s32, 1
        %p1130 = scmp.lt.s32.totalorder %s33, 1
        %s1131 = scalar_select %p1130, %s33, 1
        %s1132 = smul.addr %s1129, 2
        %s1133 = sadd.s32 %s1131, %s1132
        %s1134 = smul.addr %s1133, 8
        %s1135 = scalar_lea.vmem %s15, %s1134
        %p1136 = scmp.lt.s32.totalorder %s32, 1
        %s1137 = scalar_select %p1136, %s32, 1
        %s1138 = smul.addr %s1137, 8
        %s1139 = scalar_lea.vmem %s16, %s1138
        %s1140 = smul.u32 %s33, 8
        %v1141 = vld [vmem:[%s1045] sm:$0xff]
        %v1142 = vld [vmem:[%s1029] sm:$0xff]
        %v1143 = vld [vmem:[%s1037] sm:$0xff]
        %v1144 = vld [vmem:[%s1053] sm:$0xff]
        %v1145 = vld [vmem:[%s1103] sm:$0xff]
        %v1146 = vld [vmem:[%s1111] sm:$0xff]
        %v1147 = vld [vmem:[%s1119] sm:$0xff]
        %v1148 = vld [vmem:[%s1061] sm:$0xff]
        %v1149 = vld [vmem:[%s852] sm:$0xff]
        %s1150 = scalar_lea.vmem %s852, 8 [#allocation3]
        %v1151 = vld [vmem:[%s1150] sm:$0xff]
        %s1152 = sld [smem:[#allocation2]]
        %v1153 = vld [vmem:[%s859] sm:$0xff]
        %v1154 = vld [vmem:[%s866] sm:$0xff]
        %s1155 = scalar_lea.vmem %s859, 8 [#allocation4]
        %v1156 = vld [vmem:[%s1155] sm:$0xff]
        %s1157 = scalar_lea.vmem %s866, 8 [#allocation5]
        %v1158 = vld [vmem:[%s1157] sm:$0xff]
        %v1159 = vld [vmem:[%s1072] sm:$0xff]
        %v1160 = vld [vmem:[%s1086] sm:$0xff]
        %v1161 = vlaneseq
        %v1162 = vand.u32 %v1161, 127
        %vm1163 = vcmp.lt.s32.totalorder %v1162, 0
        %v1164 = vsub.s32 0, %v1162
        %v1165 = vsel %vm1163, %v1164, %v1162
        %v1166 = vshrl.u32 %v1165, 3
        %v1167 = vand.u32 %v1165, 7
        %v1168 = vsub.s32 0, %v1167
        %v1169 = vsel %vm1163, %v1168, %v1167
        %vm1170 = vcmp.ne.s32.totalorder %v1169, 0
        %vm1171 = vcmp.lt.s32.totalorder %v1169, 0
        %vm1172 = vmand %vm1171, %vm1170
        %v1173 = vadd.s32 %v1169, 8
        %v1174 = vsel %vm1172, %v1173, %v1169
        %vm1175 = vcmp.eq.s32.totalorder %v1174, 0
        %vm1176 = vcmp.eq.s32.totalorder %v1174, 7
        %vm1177 = vcmp.lt.s32.totalorder %v1162, 8
        %vm1178 = vcmp.ge.s32.totalorder %v1162, 120
        %v1179 = vlaneseq
        %v1180 = vshrl.u32 %v1179, 7
        %v1181 = vadd.s32 %v1180, 8
        %v1182 = vadd.s32 %v1180, 16
        %s1183 = ssub.s32 %s1140, 8
        %v1184 = vstv %s1183
        %v1185 = vadd.s32 %v1180, %v1184
        %v1186 = vadd.s32 %v1181, %v1184
        %v1187 = vadd.s32 %v1182, %v1184
        %vm1188 = vcmp.eq.s32.totalorder %v1185, 0
        %vm1189 = vcmp.eq.s32.totalorder %v1186, 0
        %vm1190 = vcmp.eq.s32.totalorder %v1187, 0
        %vm1191 = vcmp.eq.s32.totalorder %v1185, 15
        %vm1192 = vcmp.eq.s32.totalorder %v1186, 15
        %vm1193 = vcmp.eq.s32.totalorder %v1187, 15
        %v1194 = vsub.f32 %v1142, %v1141
        %v1195 = vsub.f32 %v1143, %v1141
        %v1196 = vmul.f32 %v1194, %v1194
        %1197 = vadd.xlane.f32.xlu0 %v1196
        %v1198 = vpop.xlane.xlu0 %1197
        %v1199 = vrot.slane %v1198, 4
        %v1200 = vadd.f32 %v1198, %v1199
        %v1201 = vrot.slane %v1200, 2
        %v1202 = vadd.f32 %v1200, %v1201
        %v1203 = vrot.slane %v1202, 1
        %v1204 = vadd.f32 %v1202, %v1203
        %s1205 = vtos %v1204
        %v1206 = vmul.f32 %v1195, %v1195
        %1207 = vadd.xlane.f32.xlu0 %v1206
        %v1208 = vpop.xlane.xlu0 %1207
        %v1209 = vrot.slane %v1208, 4
        %v1210 = vadd.f32 %v1208, %v1209
        %v1211 = vrot.slane %v1210, 2
        %v1212 = vadd.f32 %v1210, %v1211
        %v1213 = vrot.slane %v1212, 1
        %v1214 = vadd.f32 %v1212, %v1213
        %s1215 = vtos %v1214
        %1216 = vrot.lane.b32.xlu0 %v1151, 120
        %v1217 = vpop.permute.xlu0 %1216
        %1218 = vrot.lane.b32.xlu0 %v1151, 8
        %v1219 = vpop.permute.xlu0 %1218
        %v1220 = vsub.f32 %v1217, %v1151
        %v1221 = vsub.f32 %v1151, %v1219
        %v1222 = vsub.f32 %v1217, %v1219
        %v1223 = vmul.f32 %v1222, 0.5
        %v1224 = vsel %vm1178, 1, 0
        %vm1225 = vcmp.eq.s32.totalorder %v1224, 1
        %v1226 = vsel %vm1225, %v1221, %v1223
        %v1227 = vsel %vm1177, 1, 0
        %vm1228 = vcmp.eq.s32.totalorder %v1227, 1
        %v1229 = vsel %vm1228, %v1220, %v1226
        %v1230 = vrot.slane %v1153, 1
        %v1231 = vrot.slane %v1149, 1
        %v1232 = vrot.slane %v1154, 1
        %vm1233 = vcmp.lt.s32.totalorder %v1180, 7
        %v1234 = vsel %vm1233, %v1231, %v1232
        %v1235 = vsel %vm1233, %v1230, %v1231
        %v1236 = vsel %vm1233, %v1232, %v1230
        %v1237 = vrot.slane %v1153, 7
        %v1238 = vrot.slane %v1149, 7
        %v1239 = vrot.slane %v1154, 7
        %vm1240 = vcmp.lt.s32.totalorder %v1180, 1
        %v1241 = vsel %vm1240, %v1238, %v1239
        %v1242 = vsel %vm1240, %v1237, %v1238
        %v1243 = vsel %vm1240, %v1239, %v1237
        %v1244 = vsub.f32 %v1235, %v1153
        %v1245 = vsub.f32 %v1234, %v1149
        %v1246 = vsub.f32 %v1236, %v1154
        %v1247 = vsub.f32 %v1153, %v1243
        %v1248 = vsub.f32 %v1149, %v1242
        %v1249 = vsub.f32 %v1154, %v1241
        %v1250 = vsub.f32 %v1235, %v1243
        %v1251 = vsub.f32 %v1234, %v1242
        %v1252 = vsub.f32 %v1236, %v1241
        %v1253 = vmul.f32 %v1250, 0.5
        %v1254 = vmul.f32 %v1251, 0.5
        %v1255 = vmul.f32 %v1252, 0.5
        %v1256 = vsel %vm1191, 1, 0
        %v1257 = vsel %vm1192, 1, 0
        %v1258 = vsel %vm1193, 1, 0
        %vm1259 = vcmp.eq.s32.totalorder %v1256, 1
        %vm1260 = vcmp.eq.s32.totalorder %v1257, 1
        %vm1261 = vcmp.eq.s32.totalorder %v1258, 1
        %v1262 = vsel %vm1259, %v1247, %v1253
        %v1263 = vsel %vm1260, %v1248, %v1254
        %v1264 = vsel %vm1261, %v1249, %v1255
        %v1265 = vsel %vm1188, 1, 0
        %v1266 = vsel %vm1189, 1, 0
        %v1267 = vsel %vm1190, 1, 0
        %vm1268 = vcmp.eq.s32.totalorder %v1265, 1
        %vm1269 = vcmp.eq.s32.totalorder %v1266, 1
        %vm1270 = vcmp.eq.s32.totalorder %v1267, 1
        %v1271 = vsel %vm1268, %v1244, %v1262
        %v1272 = vsel %vm1269, %v1245, %v1263
        %v1273 = vsel %vm1270, %v1246, %v1264
        %v1274 = vadd.f32 %v1229, %v1272
        %v1275 = vmul.f32 %v1274, %v1146
        %v1276 = vmul.f32 %v1275, %v1275
        %1277 = vadd.xlane.f32.xlu0 %v1276
        %v1278 = vpop.xlane.xlu0 %1277
        %v1279 = vrot.slane %v1278, 4
        %v1280 = vadd.f32 %v1278, %v1279
        %v1281 = vrot.slane %v1280, 2
        %v1282 = vadd.f32 %v1280, %v1281
        %v1283 = vrot.slane %v1282, 1
        %v1284 = vadd.f32 %v1282, %v1283
        %s1285 = vtos %v1284
        %v1286 = vstv %s1152
        %v1287 = vmul.f32 %v1286, %v1147
        %1288 = vrot.lane.b32.xlu0 %v1149, 127
        %v1289 = vpop.permute.xlu0 %1288
        %1290 = vrot.lane.b32.xlu0 %v1149, 1
        %v1291 = vpop.permute.xlu0 %1290
        %v1292 = vsub.f32 %v1289, %v1149
        %v1293 = vsub.f32 %v1149, %v1291
        %v1294 = vsub.f32 %v1289, %v1291
        %v1295 = vmul.f32 %v1294, 0.5
        %v1296 = vsel %vm1176, 1, 0
        %vm1297 = vcmp.eq.s32.totalorder %v1296, 1
        %v1298 = vsel %vm1297, %v1293, %v1295
        %v1299 = vsel %vm1175, 1, 0
        %vm1300 = vcmp.eq.s32.totalorder %v1299, 1
        %v1301 = vsel %vm1300, %v1292, %v1298
        %1302 = vrot.lane.b32.xlu0 %v1149, 120
        %v1303 = vpop.permute.xlu0 %1302
        %1304 = vrot.lane.b32.xlu0 %v1149, 8
        %v1305 = vpop.permute.xlu0 %1304
        %v1306 = vsub.f32 %v1303, %v1149
        %v1307 = vsub.f32 %v1149, %v1305
        %v1308 = vsub.f32 %v1303, %v1305
        %v1309 = vmul.f32 %v1308, 0.5
        %v1310 = vsel %vm1225, %v1307, %v1309
        %v1311 = vsel %vm1228, %v1306, %v1310
        %v1312 = vrot.slane %v1148, 1
        %v1313 = vrot.slane %v1160, 1
        %v1314 = vsel %vm1233, %v1312, %v1313
        %v1315 = vrot.slane %v1159, 7
        %v1316 = vrot.slane %v1148, 7
        %v1317 = vsel %vm1240, %v1315, %v1316
        %v1318 = vsub.f32 %v1314, %v1148
        %v1319 = vsub.f32 %v1148, %v1317
        %v1320 = vsub.f32 %v1314, %v1317
        %v1321 = vmul.f32 %v1320, 0.5
        %v1322 = vsel %vm1260, %v1319, %v1321
        %v1323 = vsel %vm1269, %v1318, %v1322
        %1324 = vrot.lane.b32.xlu0 %v1311, 120
        %v1325 = vpop.permute.xlu0 %1324
        %1326 = vrot.lane.b32.xlu0 %v1311, 8
        %v1327 = vpop.permute.xlu0 %1326
        %v1328 = vsub.f32 %v1325, %v1311
        %v1329 = vsub.f32 %v1311, %v1327
        %v1330 = vsub.f32 %v1325, %v1327
        %v1331 = vmul.f32 %v1330, 0.5
        %v1332 = vsel %vm1225, %v1329, %v1331
        %v1333 = vsel %vm1228, %v1328, %v1332
        %v1334 = vrot.slane %v1272, 1
        %v1335 = vrot.slane %v1273, 1
        %v1336 = vsel %vm1233, %v1334, %v1335
        %v1337 = vrot.slane %v1271, 7
        %v1338 = vrot.slane %v1272, 7
        %v1339 = vsel %vm1240, %v1337, %v1338
        %v1340 = vsub.f32 %v1336, %v1272
        %v1341 = vsub.f32 %v1272, %v1339
        %v1342 = vsub.f32 %v1336, %v1339
        %v1343 = vmul.f32 %v1342, 0.5
        %v1344 = vsel %vm1260, %v1341, %v1343
        %v1345 = vsel %vm1269, %v1340, %v1344
        %v1346 = vmul.f32 %v1301, %v1145
        %v1347 = vmul.f32 %v1151, %v1311
        %v1348 = vmul.f32 %v1149, %v1272
        %v1349 = vadd.f32 %v1347, %v1348
        %v1350 = vadd.f32 %v1349, %v1323
        %v1351 = vmul.f32 %v1350, %v1146
        %v1352 = vadd.f32 %v1346, %v1351
        %v1353 = vadd.f32 %v1333, %v1345
        %v1354 = vmul.f32 %v1287, %v1353
        %v1355 = vsub.f32 %v1352, %v1354
        %v1356 = vmul.f32 %v1355, %v1355
        %1357 = vadd.xlane.f32.xlu0 %v1356
        %v1358 = vpop.xlane.xlu0 %1357
        %v1359 = vrot.slane %v1358, 4
        %v1360 = vadd.f32 %v1358, %v1359
        %v1361 = vrot.slane %v1360, 2
        %v1362 = vadd.f32 %v1360, %v1361
        %v1363 = vrot.slane %v1362, 1
        %v1364 = vadd.f32 %v1362, %v1363
        %s1365 = vtos %v1364
        %s1366 = sadd.f32 %s1285, %s1365
        %1367 = vrot.lane.b32.xlu0 %v1151, 127
        %v1368 = vpop.permute.xlu0 %1367
        %1369 = vrot.lane.b32.xlu0 %v1151, 1
        %v1370 = vpop.permute.xlu0 %1369
        %v1371 = vsub.f32 %v1368, %v1151
        %v1372 = vsub.f32 %v1151, %v1370
        %v1373 = vsub.f32 %v1368, %v1370
        %v1374 = vmul.f32 %v1373, 0.5
        %v1375 = vsel %vm1297, %v1372, %v1374
        %v1376 = vsel %vm1300, %v1371, %v1375
        %v1377 = vrot.slane %v1156, 1
        %v1378 = vrot.slane %v1151, 1
        %v1379 = vrot.slane %v1158, 1
        %v1380 = vsel %vm1233, %v1378, %v1379
        %v1381 = vsel %vm1233, %v1377, %v1378
        %v1382 = vsel %vm1233, %v1379, %v1377
        %v1383 = vrot.slane %v1156, 7
        %v1384 = vrot.slane %v1151, 7
        %v1385 = vrot.slane %v1158, 7
        %v1386 = vsel %vm1240, %v1384, %v1385
        %v1387 = vsel %vm1240, %v1383, %v1384
        %v1388 = vsel %vm1240, %v1385, %v1383
        %v1389 = vsub.f32 %v1381, %v1156
        %v1390 = vsub.f32 %v1380, %v1151
        %v1391 = vsub.f32 %v1382, %v1158
        %v1392 = vsub.f32 %v1156, %v1388
        %v1393 = vsub.f32 %v1151, %v1387
        %v1394 = vsub.f32 %v1158, %v1386
        %v1395 = vsub.f32 %v1381, %v1388
        %v1396 = vsub.f32 %v1380, %v1387
        %v1397 = vsub.f32 %v1382, %v1386
        %v1398 = vmul.f32 %v1395, 0.5
        %v1399 = vmul.f32 %v1396, 0.5
        %v1400 = vmul.f32 %v1397, 0.5
        %v1401 = vsel %vm1259, %v1392, %v1398
        %v1402 = vsel %vm1260, %v1393, %v1399
        %v1403 = vsel %vm1261, %v1394, %v1400
        %v1404 = vsel %vm1268, %v1389, %v1401
        %v1405 = vsel %vm1269, %v1390, %v1402
        %v1406 = vsel %vm1270, %v1391, %v1403
        %1407 = vrot.lane.b32.xlu0 %v1148, 120
        %v1408 = vpop.permute.xlu0 %1407
        %1409 = vrot.lane.b32.xlu0 %v1148, 8
        %v1410 = vpop.permute.xlu0 %1409
        %v1411 = vsub.f32 %v1408, %v1148
        %v1412 = vsub.f32 %v1148, %v1410
        %v1413 = vsub.f32 %v1408, %v1410
        %v1414 = vmul.f32 %v1413, 0.5
        %v1415 = vsel %vm1225, %v1412, %v1414
        %v1416 = vsel %vm1228, %v1411, %v1415
        %1417 = vrot.lane.b32.xlu0 %v1229, 120
        %v1418 = vpop.permute.xlu0 %1417
        %1419 = vrot.lane.b32.xlu0 %v1229, 8
        %v1420 = vpop.permute.xlu0 %1419
        %v1421 = vsub.f32 %v1418, %v1229
        %v1422 = vsub.f32 %v1229, %v1420
        %v1423 = vsub.f32 %v1418, %v1420
        %v1424 = vmul.f32 %v1423, 0.5
        %v1425 = vsel %vm1225, %v1422, %v1424
        %v1426 = vsel %vm1228, %v1421, %v1425
        %v1427 = vrot.slane %v1405, 1
        %v1428 = vrot.slane %v1406, 1
        %v1429 = vsel %vm1233, %v1427, %v1428
        %v1430 = vrot.slane %v1404, 7
        %v1431 = vrot.slane %v1405, 7
        %v1432 = vsel %vm1240, %v1430, %v1431
        %v1433 = vsub.f32 %v1429, %v1405
        %v1434 = vsub.f32 %v1405, %v1432
        %v1435 = vsub.f32 %v1429, %v1432
        %v1436 = vmul.f32 %v1435, 0.5
        %v1437 = vsel %vm1260, %v1434, %v1436
        %v1438 = vsel %vm1269, %v1433, %v1437
        %v1439 = vmul.f32 %v1376, %v1145
        %v1440 = vmul.f32 %v1151, %v1229
        %v1441 = vmul.f32 %v1149, %v1405
        %v1442 = vadd.f32 %v1440, %v1441
        %v1443 = vadd.f32 %v1442, %v1416
        %v1444 = vmul.f32 %v1443, %v1146
        %v1445 = vadd.f32 %v1439, %v1444
        %v1446 = vadd.f32 %v1426, %v1438
        %v1447 = vmul.f32 %v1287, %v1446
        %v1448 = vsub.f32 %v1445, %v1447
        %v1449 = vmul.f32 %v1448, %v1448
        %1450 = vadd.xlane.f32.xlu0 %v1449
        %v1451 = vpop.xlane.xlu0 %1450
        %v1452 = vrot.slane %v1451, 4
        %v1453 = vadd.f32 %v1451, %v1452
        %v1454 = vrot.slane %v1453, 2
        %v1455 = vadd.f32 %v1453, %v1454
        %v1456 = vrot.slane %v1455, 1
        %v1457 = vadd.f32 %v1455, %v1456
        %s1458 = vtos %v1457
        %s1459 = sadd.f32 %s1366, %s1458
        %1460 = vrot.lane.b32.xlu0 %v1141, 1
        %v1461 = vpop.permute.xlu0 %1460
        %v1462 = vsub.f32 %v1461, %v1141
        %v1463 = vld [vmem:[%s1127] sm:$0xff]
        %v1464 = vld [vmem:[%s1135] sm:$0xff]
        %v1465 = vsub.f32 %v1463, %v1464
        %v1466 = vmul.f32 %v1462, %v1462
        %v1467 = vsel %vm1300, 0.0, %v1466
        %1468 = vadd.xlane.f32.xlu0 %v1467
        %v1469 = vpop.xlane.xlu0 %1468
        %v1470 = vrot.slane %v1469, 4
        %v1471 = vadd.f32 %v1469, %v1470
        %v1472 = vrot.slane %v1471, 2
        %v1473 = vadd.f32 %v1471, %v1472
        %v1474 = vrot.slane %v1473, 1
        %v1475 = vadd.f32 %v1473, %v1474
        %s1476 = vtos %v1475
        %v1477 = vmul.f32 %v1465, %v1465
        %vm1478 = vcmask 130048
        %v1479 = vsel %vm1478, %v1477, 0.0
        %1480 = vadd.xlane.f32.xlu0 %v1479
        %v1481 = vpop.xlane.xlu0 %1480
        %v1482 = vrot.slane %v1481, 4
        %v1483 = vadd.f32 %v1481, %v1482
        %v1484 = vrot.slane %v1483, 2
        %v1485 = vadd.f32 %v1483, %v1484
        %v1486 = vrot.slane %v1485, 1
        %v1487 = vadd.f32 %v1485, %v1486
        %s1488 = vtos %v1487
        %s1489 = sadd.f32 %s1476, %s1488
        %v1490 = vmul.f32 %v1144, %v1145
        %v1491 = vsub.f32 %v1490, %v1141
        %v1492 = vmul.f32 %v1491, %v1491
        %1493 = vadd.xlane.f32.xlu0 %v1492
        %v1494 = vpop.xlane.xlu0 %1493
        %v1495 = vrot.slane %v1494, 4
        %v1496 = vadd.f32 %v1494, %v1495
        %v1497 = vrot.slane %v1496, 2
        %v1498 = vadd.f32 %v1496, %v1497
        %v1499 = vrot.slane %v1498, 1
        %v1500 = vadd.f32 %v1498, %v1499
        %s1501 = vtos %v1500
        %vm1502 = vcmp.eq.s32.totalorder %v1180, 0
        %v1503 = vstv %s1205
        %v1504 = vsel %vm1502, %v1503, 0.0
        %vm1505 = vcmp.eq.s32.totalorder %v1180, 1
        %v1506 = vstv %s1215
        %v1507 = vsel %vm1505, %v1506, 0.0
        %v1508 = vadd.f32 %v1504, %v1507
        %vm1509 = vcmp.eq.s32.totalorder %v1180, 2
        %v1510 = vstv %s1459
        %v1511 = vsel %vm1509, %v1510, 0.0
        %v1512 = vadd.f32 %v1508, %v1511
        %vm1513 = vcmp.eq.s32.totalorder %v1180, 3
        %v1514 = vstv %s1489
        %v1515 = vsel %vm1513, %v1514, 0.0
        %v1516 = vadd.f32 %v1512, %v1515
        %vm1517 = vcmp.eq.s32.totalorder %v1180, 4
        %v1518 = vstv %s1501
        %v1519 = vsel %vm1517, %v1518, 0.0
        %v1520 = vadd.f32 %v1516, %v1519
        %p1521 = scmp.eq.s32.totalorder %s33, 0
        // Predicated region
        $region199: #{loss_forward.1} parent=185 // pred_check
          %p1522 = pneg %p1521
        $region200: #{loss_forward.1} parent=185 // pred_check_branch
          %1524 = sbr.rel (%p1522) target = $region202
        $region201: #{loss_forward.1} parent=185 // pred_region
          %1525 = vst [vmem:[%s1139] sm:$0xff] %v1520
        $region202: #{loss_forward.1} parent=185 // pred_fallthru
          _
        %p1526 = scmp.ne.s32.totalorder %s33, 0
        // Predicated region
        $region203: #{loss_forward.1} parent=185 // pred_check
          %p1527 = pneg %p1526
        $region204: #{loss_forward.1} parent=185 // pred_check_branch
          %1529 = sbr.rel (%p1527) target = $region206
        $region205: #{loss_forward.1} parent=185 // pred_region
          %v1530 = vld [vmem:[%s1139] sm:$0xff]
          %v1531 = vadd.f32 %v1530, %v1520
          %1532 = vst [vmem:[%s1139] sm:$0xff] %v1531
        $region206: #{loss_forward.1} parent=185 // pred_fallthru
          _
        %p1533 = scmp.lt.s32.totalorder %s32, 1
        %s1534 = scalar_select %p1533, %s32, 1
        %s1535 = smul.addr %s1534, 8
        %s1536 = scalar_lea.vmem %s16, %s1535
        // Predicated region
        $region207: #{loss_forward.1} parent=185 // pred_check
          %p1537 = pneg %p523
        $region208: #{loss_forward.1} parent=185 // pred_check_branch
          %1539 = sbr.rel (%p1537) target = $region210
        $region209: #{loss_forward.1} parent=185 // pred_region
          _
        $region210: #{loss_forward.1} parent=185 // pred_fallthru
          _
      $region186: #{loss_forward.1} parent=5 // pred_fallthru
        _
      %p1540 = scmp.le.s32.totalorder 2, %s23
      // Predicated region
      $region211: #{loss_forward.1} parent=5 // pred_check
        %p1541 = pneg %p1540
      $region212: #{loss_forward.1} parent=5 // pred_check_branch
        %1543 = sbr.rel (%p1541) target = $region214
      $region213: #{loss_forward.1} parent=5 // pred_region
        %s1544 = ssub.s32 %s23, 2
        // Predicated region
        $region215: #{loss_forward.1} parent=213 // pred_check
          %p1545 = pneg %p529
        $region216: #{loss_forward.1} parent=213 // pred_check_branch
          %1547 = sbr.rel (%p1545) target = $region218
        $region217: #{loss_forward.1} parent=213 // pred_region
          %p1548 = scmp.lt.s32.totalorder %s34, 1
          %s1549 = scalar_select %p1548, %s34, 1
          %s1550 = smul.addr %s1549, 8
          %s1551 = scalar_lea.vmem %s16, %s1550
        $region218: #{loss_forward.1} parent=213 // pred_fallthru
          _
      $region214: #{loss_forward.1} parent=5 // pred_fallthru
        _
    $region6: #{loss_forward.1} parent=1 // loop_footer
      %s27 = sadd.s32 1, %s23
    $region7: #{loss_forward.1} parent=1 // loop_footer_branch
      %22 = sbr.rel target = $region3
    $region8: #{loss_forward.1} parent=1 // loop_exit
      _

</llo_original>
